<compile_context>
chip_gen: v7x
topology: tpu7x:2x2x1
jax: 0.10.0
libtpu: 0.0.40
codegen_flags: <defaults>
</compile_context>

<pallas_src>
import functools

import jax
import jax.numpy as jnp
from jax.experimental import pallas as pl
from jax.experimental.pallas import tpu as pltpu


# ----------------------------------------------------------------------------
# One-time probe: which direction does pltpu.roll rotate on this backend?
# ----------------------------------------------------------------------------
@functools.lru_cache(maxsize=None)
def _roll_sign() -> int:
    """+1: pltpu.roll(x, s) == jnp.roll(x, s); -1: opposite; 0: unknown."""
    def probe(x_ref, o_ref):
        o_ref[...] = pltpu.roll(x_ref[...], shift=1, axis=1)

    try:
        x = jnp.arange(8 * 128, dtype=jnp.float32).reshape(8, 128)
        y = pl.pallas_call(
            probe, out_shape=jax.ShapeDtypeStruct((8, 128), jnp.float32))(x)
        if bool(jnp.array_equal(y, jnp.roll(x, 1, axis=1))):
            return 1
        if bool(jnp.array_equal(y, jnp.roll(x, -1, axis=1))):
            return -1
    except Exception:
        pass
    return 0


def _lane_shift_fn():
    """Returns fn(x, s, n) such that fn(x, s, n)[..., m] == x[..., (m + s) % n]."""
    sign = _roll_sign()
    if sign == 1:
        return lambda x, s, n: pltpu.roll(x, shift=(-s) % n, axis=1)
    if sign == -1:
        return lambda x, s, n: pltpu.roll(x, shift=s % n, axis=1)
    # Guaranteed-semantics fallback: lowers to two lane slices + a concat.
    return lambda x, s, n: jnp.roll(x, -s, axis=1)


# ----------------------------------------------------------------------------
# Kernel: per image, build the 9 taps in VMEM, conv + bias, masked by tap
# validity (== zero padding), squared error, lane-dense partial-SSE output.
# ----------------------------------------------------------------------------
def _make_kernel(C, HW, shifts, shift_fn):
    lg, rem = divmod(HW, 128)

    def kernel(x_ref, hr_ref, w_ref, b_ref, m_ref, o_ref):
        x = x_ref[...]                                     # (C, HW)
        acc = None
        for t, (s, needs_mask) in enumerate(shifts):       # static 9-tap unroll
            xt = x if s == 0 else shift_fn(x, s, HW)       # tap via lane roll (XLU)
            if needs_mask:                                 # centre tap always valid
                xt = xt * m_ref[t]                         # zero out-of-image taps
            p = jnp.dot(w_ref[t], xt, preferred_element_type=jnp.float32)
            acc = p if acc is None else acc + p            # (C, HW) f32
        out = acc + b_ref[...]                             # (C,1) bias broadcast
        diff = out - hr_ref[...].astype(jnp.float32)
        sq = diff * diff                                   # (C, HW) full-width VPU

        # Pairwise tree fold of 128-lane groups (aligned static slices), then
        # one sublane reduce -> lane-dense (1,128) partial SSE for this image.
        parts = [sq[:, g * 128:(g + 1) * 128] for g in range(lg)]
        if rem:                                            # generic tail (unused here)
            tail = sq[:, lg * 128:]
            parts.append(jnp.concatenate(
                [tail, jnp.zeros((C, 128 - rem), tail.dtype)], axis=1))
        while len(parts) > 1:
            nxt = [parts[i] + parts[i + 1] for i in range(0, len(parts) - 1, 2)]
            if len(parts) % 2:
                nxt.append(parts[-1])
            parts = nxt
        o_ref[...] = jnp.sum(parts[0], axis=0, keepdims=True).reshape(1, 1, 128)

    return kernel


# ----------------------------------------------------------------------------
# Wrapper
# ----------------------------------------------------------------------------
def with_loss_init_forward(lr_nchw, hr_nchw, weight_oihw, bias,
                           *, stream_dtype=jnp.float32):
    """sqrt(mean((conv3x3_same(lr, weight) + bias - hr)^2)) as a scalar f32."""
    N, C, H, W = lr_nchw.shape
    HW = H * W

    # Per-tap lane shift and "needs a validity mask" flag (tap order kh, kw).
    taps = [(dy, dx) for dy in range(3) for dx in range(3)]
    shifts = tuple(((dy - 1) * W + (dx - 1), not (dy == 1 and dx == 1))
                   for dy, dx in taps)

    # (9,1,HW) 0/1 masks: tap (dy,dx) of output pixel (y,x) reads inside the
    # image iff 0 <= y+dy-1 < H and 0 <= x+dx-1 < W.  Rolled-in wrap values are
    # zeroed, which is exactly what zero padding would have contributed.
    ys = jnp.arange(H).reshape(H, 1)
    xs = jnp.arange(W).reshape(1, W)
    tap_mask = jnp.stack(
        [((ys + dy - 1 >= 0) & (ys + dy - 1 < H) &
          (xs + dx - 1 >= 0) & (xs + dx - 1 < W)).reshape(1, HW)
         for dy, dx in taps], axis=0).astype(stream_dtype)          # (9,1,HW)

    # PyTorch (Cout,Cin,kh,kw) -> per-tap (9, Cout, Cin), matching tap order.
    w_taps = jnp.transpose(weight_oihw, (2, 3, 0, 1)).reshape(9, C, C)
    w_taps = w_taps.astype(stream_dtype)
    b2 = bias.reshape(C, 1).astype(jnp.float32)

    # Native-layout streams: contiguous NCHW -> (N,C,HW) reshape is free, so
    # lr / hr each cross HBM exactly once (no im2col, no pad, no transpose).
    x3 = lr_nchw.reshape(N, C, HW).astype(stream_dtype)
    h3 = hr_nchw.reshape(N, C, HW).astype(stream_dtype)

    kernel = _make_kernel(C, HW, shifts, _lane_shift_fn())

    itemsize = jnp.dtype(stream_dtype).itemsize
    cost = pl.CostEstimate(
        flops=N * (18 * C * C * HW + 6 * C * HW),
        transcendentals=0,
        bytes_accessed=(2 * N * C * HW * itemsize            # lr + hr, once each
                        + (9 * C * C + 9 * HW) * itemsize    # weights + masks
                        + C * 4 + N * 128 * 4))              # bias + partial rows

    # Double-buffered per-step VMEM estimate; tiny here, but keep v7x's 64 MiB
    # ceiling in mind for production C*H*W (see TODO at top).
    est_vmem = 2 * (2 * C * HW * itemsize + (9 * C * C + 9 * HW) * itemsize
                    + C * 4) + 2 * 128 * 4
    cparams = dict(dimension_semantics=("parallel",))
    if est_vmem > (24 << 20):
        cparams["vmem_limit_bytes"] = min(est_vmem + (16 << 20), 96 << 20)

    partials = pl.pallas_call(
        kernel,
        out_shape=jax.ShapeDtypeStruct((N, 1, 128), jnp.float32),
        grid_spec=pltpu.PrefetchScalarGridSpec(
            num_scalar_prefetch=0,
            grid=(N,),
            in_specs=[
                pl.BlockSpec((None, C, HW), lambda n: (n, 0, 0)),  # lr image
                pl.BlockSpec((None, C, HW), lambda n: (n, 0, 0)),  # hr image
                pl.BlockSpec((9, C, C), lambda n: (0, 0, 0)),      # tap weights
                pl.BlockSpec((C, 1), lambda n: (0, 0)),            # bias
                pl.BlockSpec((9, 1, HW), lambda n: (0, 0, 0)),     # tap masks
            ],
            out_specs=pl.BlockSpec((1, 1, 128), lambda n: (n, 0, 0)),
        ),
        compiler_params=pltpu.CompilerParams(**cparams),
        cost_estimate=cost,
    )(x3, h3, w_taps, b2, tap_mask)

    sse = jnp.sum(partials)
    mse = sse / jnp.float32(N * C * H * W)
    # rmse = sqrt(loss); mean(rmse) of a scalar is the scalar itself.
    return jnp.sqrt(mse)


# ----------------------------------------------------------------------------
# Pure-JAX reference
# ----------------------------------------------------------------------------
def _reference(lr_nchw, hr_nchw, weight_oihw, bias):
    out = jax.lax.conv_general_dilated(
        lr_nchw.astype(jnp.float32), weight_oihw.astype(jnp.float32),
        window_strides=(1, 1), padding="SAME",
        dimension_numbers=("NCHW", "OIHW", "NCHW"))
    out = out + bias.reshape(1, -1, 1, 1)
    mse = jnp.mean((out - hr_nchw.astype(jnp.float32)) ** 2)
    return jnp.sqrt(mse)


if __name__ == "__main__":
    key = jax.random.PRNGKey(0)
    k1, k2, k3, k4 = jax.random.split(key, 4)

    N, C, H, W = 2, 4, 16, 16
    lr = jax.random.normal(k1, (N, C, H, W), jnp.float32)
    hr = jax.random.normal(k2, (N, C, H, W), jnp.float32)

    # Deterministic synthetic Conv2d(C, C, 3, padding=1) parameters.
    weight = 0.1 * jax.random.normal(k3, (C, C, 3, 3), jnp.float32)
    bias = 0.05 * jax.random.normal(k4, (C,), jnp.float32)

    avg_rmse = with_loss_init_forward(lr, hr, weight, bias)
    jax.block_until_ready(avg_rmse)

    ref = _reference(lr, hr, weight, bias)
    assert jnp.allclose(avg_rmse, ref, rtol=1e-5, atol=1e-5), (avg_rmse, ref)

    print("KERNEL_OK")
</pallas_src>

<mosaic_0001>
module attributes {stable_mosaic.version = 11 : i64} {
  func.func @probe(%arg0: memref<8x128xf32, #tpu.memory_space<vmem>>, %arg1: memref<8x128xf32, #tpu.memory_space<vmem>>) attributes {dimension_semantics = [], scalar_prefetch = 0 : i64, scratch_operands = 0 : i64, tpu.core_type = #tpu.core_type<tc>} {
    %c0 = arith.constant 0 : index
    %c0_0 = arith.constant 0 : index
    %0 = vector.load %arg0[%c0, %c0_0] : memref<8x128xf32, #tpu.memory_space<vmem>>, vector<8x128xf32>
    %c1_i32 = arith.constant 1 : i32
    %1 = tpu.dynamic_rotate %0 by %c1_i32 dim 1 : vector<8x128xf32>, i32 -> vector<8x128xf32>
    %c0_1 = arith.constant 0 : index
    %c0_2 = arith.constant 0 : index
    %2 = vector.load %arg1[%c0_1, %c0_2] : memref<8x128xf32, #tpu.memory_space<vmem>>, vector<8x128xf32>
    tpu.vector_store %arg1[%c0_1, %c0_2], %1 {strides = array<i32>} : memref<8x128xf32, #tpu.memory_space<vmem>>, vector<8x128xf32>,
    return
  }
}

module attributes {stable_mosaic.version = 11 : i64} {
  func.func @kernel(%arg0: i32, %arg1: memref<1x4x256xf32, #tpu.memory_space<vmem>>, %arg2: memref<1x4x256xf32, #tpu.memory_space<vmem>>, %arg3: memref<9x4x4xf32, #tpu.memory_space<vmem>>, %arg4: memref<4x1xf32, #tpu.memory_space<vmem>>, %arg5: memref<9x1x256xf32, #tpu.memory_space<vmem>>, %arg6: memref<1x1x128xf32, #tpu.memory_space<vmem>>) attributes {dimension_semantics = [#tpu.dimension_semantics<parallel>], iteration_bounds = array<i64: 2>, scalar_prefetch = 0 : i64, scratch_operands = 0 : i64, tpu.core_type = #tpu.core_type<tc>, window_params = [{transform_indices = @transform_0, window_bounds = array<i64: 1, 4, 256>}, {transform_indices = @transform_1, window_bounds = array<i64: 1, 4, 256>}, {pipeline_mode = #tpu.pipeline_mode<synchronous>, transform_indices = @transform_2, window_bounds = array<i64: 9, 4, 4>}, {pipeline_mode = #tpu.pipeline_mode<synchronous>, transform_indices = @transform_3, window_bounds = array<i64: 4, 1>}, {pipeline_mode = #tpu.pipeline_mode<synchronous>, transform_indices = @transform_4, window_bounds = array<i64: 9, 1, 256>}, {transform_indices = @transform_5, window_bounds = array<i64: 1, 1, 128>}]} {
    %c0 = arith.constant 0 : index
    %c0_0 = arith.constant 0 : index
    %c0_1 = arith.constant 0 : index
    %0 = vector.load %arg1[%c0, %c0_0, %c0_1] : memref<1x4x256xf32, #tpu.memory_space<vmem>>, vector<1x4x256xf32>
    %1 = vector.shape_cast %0 : vector<1x4x256xf32> to vector<4x256xf32>
    %2 = vector.extract_strided_slice %1 {offsets = [0, 239], sizes = [4, 17], strides = [1, 1]} : vector<4x256xf32> to vector<4x17xf32>
    %3 = vector.extract_strided_slice %1 {offsets = [0, 0], sizes = [4, 239], strides = [1, 1]} : vector<4x256xf32> to vector<4x239xf32>
    %4 = tpu.concatenate %2, %3 in 1 : vector<4x17xf32>, vector<4x239xf32> -> vector<4x256xf32>
    %c0_2 = arith.constant 0 : index
    %c0_3 = arith.constant 0 : index
    %c0_4 = arith.constant 0 : index
    %5 = vector.load %arg5[%c0_2, %c0_3, %c0_4] : memref<9x1x256xf32, #tpu.memory_space<vmem>>, vector<1x1x256xf32>
    %6 = vector.shape_cast %5 : vector<1x1x256xf32> to vector<1x256xf32>
    %7 = vector.broadcast %6 : vector<1x256xf32> to vector<4x256xf32>
    %8 = arith.mulf %4, %7 : vector<4x256xf32>
    %c0_5 = arith.constant 0 : index
    %c0_6 = arith.constant 0 : index
    %c0_7 = arith.constant 0 : index
    %9 = vector.load %arg3[%c0_5, %c0_6, %c0_7] : memref<9x4x4xf32, #tpu.memory_space<vmem>>, vector<1x4x4xf32>
    %10 = vector.shape_cast %9 : vector<1x4x4xf32> to vector<4x4xf32>
    %cst = arith.constant dense<0.000000e+00> : vector<4x256xf32>
    %11 = tpu.matmul %10, %8, %cst {dimension_numbers = #tpu.dot_dimension_numbers<[1], [0], [0], [1], [0, 0, 1, 1], [], []>} : vector<4x4xf32>, vector<4x256xf32>, vector<4x256xf32> -> vector<4x256xf32>
    %12 = vector.extract_strided_slice %1 {offsets = [0, 240], sizes = [4, 16], strides = [1, 1]} : vector<4x256xf32> to vector<4x16xf32>
    %13 = vector.extract_strided_slice %1 {offsets = [0, 0], sizes = [4, 240], strides = [1, 1]} : vector<4x256xf32> to vector<4x240xf32>
    %14 = tpu.concatenate %12, %13 in 1 : vector<4x16xf32>, vector<4x240xf32> -> vector<4x256xf32>
    %c1 = arith.constant 1 : index
    %c0_8 = arith.constant 0 : index
    %c0_9 = arith.constant 0 : index
    %15 = vector.load %arg5[%c1, %c0_8, %c0_9] : memref<9x1x256xf32, #tpu.memory_space<vmem>>, vector<1x1x256xf32>
    %16 = vector.shape_cast %15 : vector<1x1x256xf32> to vector<1x256xf32>
    %17 = vector.broadcast %16 : vector<1x256xf32> to vector<4x256xf32>
    %18 = arith.mulf %14, %17 : vector<4x256xf32>
    %c1_10 = arith.constant 1 : index
    %c0_11 = arith.constant 0 : index
    %c0_12 = arith.constant 0 : index
    %19 = vector.load %arg3[%c1_10, %c0_11, %c0_12] : memref<9x4x4xf32, #tpu.memory_space<vmem>>, vector<1x4x4xf32>
    %20 = vector.shape_cast %19 : vector<1x4x4xf32> to vector<4x4xf32>
    %cst_13 = arith.constant dense<0.000000e+00> : vector<4x256xf32>
    %21 = tpu.matmul %20, %18, %cst_13 {dimension_numbers = #tpu.dot_dimension_numbers<[1], [0], [0], [1], [0, 0, 1, 1], [], []>} : vector<4x4xf32>, vector<4x256xf32>, vector<4x256xf32> -> vector<4x256xf32>
    %22 = arith.addf %11, %21 : vector<4x256xf32>
    %23 = vector.extract_strided_slice %1 {offsets = [0, 241], sizes = [4, 15], strides = [1, 1]} : vector<4x256xf32> to vector<4x15xf32>
    %24 = vector.extract_strided_slice %1 {offsets = [0, 0], sizes = [4, 241], strides = [1, 1]} : vector<4x256xf32> to vector<4x241xf32>
    %25 = tpu.concatenate %23, %24 in 1 : vector<4x15xf32>, vector<4x241xf32> -> vector<4x256xf32>
    %c2 = arith.constant 2 : index
    %c0_14 = arith.constant 0 : index
    %c0_15 = arith.constant 0 : index
    %26 = vector.load %arg5[%c2, %c0_14, %c0_15] : memref<9x1x256xf32, #tpu.memory_space<vmem>>, vector<1x1x256xf32>
    %27 = vector.shape_cast %26 : vector<1x1x256xf32> to vector<1x256xf32>
    %28 = vector.broadcast %27 : vector<1x256xf32> to vector<4x256xf32>
    %29 = arith.mulf %25, %28 : vector<4x256xf32>
    %c2_16 = arith.constant 2 : index
    %c0_17 = arith.constant 0 : index
    %c0_18 = arith.constant 0 : index
    %30 = vector.load %arg3[%c2_16, %c0_17, %c0_18] : memref<9x4x4xf32, #tpu.memory_space<vmem>>, vector<1x4x4xf32>
    %31 = vector.shape_cast %30 : vector<1x4x4xf32> to vector<4x4xf32>
    %cst_19 = arith.constant dense<0.000000e+00> : vector<4x256xf32>
    %32 = tpu.matmul %31, %29, %cst_19 {dimension_numbers = #tpu.dot_dimension_numbers<[1], [0], [0], [1], [0, 0, 1, 1], [], []>} : vector<4x4xf32>, vector<4x256xf32>, vector<4x256xf32> -> vector<4x256xf32>
    %33 = arith.addf %22, %32 : vector<4x256xf32>
    %34 = vector.extract_strided_slice %1 {offsets = [0, 255], sizes = [4, 1], strides = [1, 1]} : vector<4x256xf32> to vector<4x1xf32>
    %35 = vector.extract_strided_slice %1 {offsets = [0, 0], sizes = [4, 255], strides = [1, 1]} : vector<4x256xf32> to vector<4x255xf32>
    %36 = tpu.concatenate %34, %35 in 1 : vector<4x1xf32>, vector<4x255xf32> -> vector<4x256xf32>
    %c3 = arith.constant 3 : index
    %c0_20 = arith.constant 0 : index
    %c0_21 = arith.constant 0 : index
    %37 = vector.load %arg5[%c3, %c0_20, %c0_21] : memref<9x1x256xf32, #tpu.memory_space<vmem>>, vector<1x1x256xf32>
    %38 = vector.shape_cast %37 : vector<1x1x256xf32> to vector<1x256xf32>
    %39 = vector.broadcast %38 : vector<1x256xf32> to vector<4x256xf32>
    %40 = arith.mulf %36, %39 : vector<4x256xf32>
    %c3_22 = arith.constant 3 : index
    %c0_23 = arith.constant 0 : index
    %c0_24 = arith.constant 0 : index
    %41 = vector.load %arg3[%c3_22, %c0_23, %c0_24] : memref<9x4x4xf32, #tpu.memory_space<vmem>>, vector<1x4x4xf32>
    %42 = vector.shape_cast %41 : vector<1x4x4xf32> to vector<4x4xf32>
    %cst_25 = arith.constant dense<0.000000e+00> : vector<4x256xf32>
    %43 = tpu.matmul %42, %40, %cst_25 {dimension_numbers = #tpu.dot_dimension_numbers<[1], [0], [0], [1], [0, 0, 1, 1], [], []>} : vector<4x4xf32>, vector<4x256xf32>, vector<4x256xf32> -> vector<4x256xf32>
    %44 = arith.addf %33, %43 : vector<4x256xf32>
    %c4 = arith.constant 4 : index
    %c0_26 = arith.constant 0 : index
    %c0_27 = arith.constant 0 : index
    %45 = vector.load %arg3[%c4, %c0_26, %c0_27] : memref<9x4x4xf32, #tpu.memory_space<vmem>>, vector<1x4x4xf32>
    %46 = vector.shape_cast %45 : vector<1x4x4xf32> to vector<4x4xf32>
    %cst_28 = arith.constant dense<0.000000e+00> : vector<4x256xf32>
    %47 = tpu.matmul %46, %1, %cst_28 {dimension_numbers = #tpu.dot_dimension_numbers<[1], [0], [0], [1], [0, 0, 1, 1], [], []>} : vector<4x4xf32>, vector<4x256xf32>, vector<4x256xf32> -> vector<4x256xf32>
    %48 = arith.addf %44, %47 : vector<4x256xf32>
    %49 = vector.extract_strided_slice %1 {offsets = [0, 1], sizes = [4, 255], strides = [1, 1]} : vector<4x256xf32> to vector<4x255xf32>
    %50 = vector.extract_strided_slice %1 {offsets = [0, 0], sizes = [4, 1], strides = [1, 1]} : vector<4x256xf32> to vector<4x1xf32>
    %51 = tpu.concatenate %49, %50 in 1 : vector<4x255xf32>, vector<4x1xf32> -> vector<4x256xf32>
    %c5 = arith.constant 5 : index
    %c0_29 = arith.constant 0 : index
    %c0_30 = arith.constant 0 : index
    %52 = vector.load %arg5[%c5, %c0_29, %c0_30] : memref<9x1x256xf32, #tpu.memory_space<vmem>>, vector<1x1x256xf32>
    %53 = vector.shape_cast %52 : vector<1x1x256xf32> to vector<1x256xf32>
    %54 = vector.broadcast %53 : vector<1x256xf32> to vector<4x256xf32>
    %55 = arith.mulf %51, %54 : vector<4x256xf32>
    %c5_31 = arith.constant 5 : index
    %c0_32 = arith.constant 0 : index
    %c0_33 = arith.constant 0 : index
    %56 = vector.load %arg3[%c5_31, %c0_32, %c0_33] : memref<9x4x4xf32, #tpu.memory_space<vmem>>, vector<1x4x4xf32>
    %57 = vector.shape_cast %56 : vector<1x4x4xf32> to vector<4x4xf32>
    %cst_34 = arith.constant dense<0.000000e+00> : vector<4x256xf32>
    %58 = tpu.matmul %57, %55, %cst_34 {dimension_numbers = #tpu.dot_dimension_numbers<[1], [0], [0], [1], [0, 0, 1, 1], [], []>} : vector<4x4xf32>, vector<4x256xf32>, vector<4x256xf32> -> vector<4x256xf32>
    %59 = arith.addf %48, %58 : vector<4x256xf32>
    %60 = vector.extract_strided_slice %1 {offsets = [0, 15], sizes = [4, 241], strides = [1, 1]} : vector<4x256xf32> to vector<4x241xf32>
    %61 = vector.extract_strided_slice %1 {offsets = [0, 0], sizes = [4, 15], strides = [1, 1]} : vector<4x256xf32> to vector<4x15xf32>
    %62 = tpu.concatenate %60, %61 in 1 : vector<4x241xf32>, vector<4x15xf32> -> vector<4x256xf32>
    %c6 = arith.constant 6 : index
    %c0_35 = arith.constant 0 : index
    %c0_36 = arith.constant 0 : index
    %63 = vector.load %arg5[%c6, %c0_35, %c0_36] : memref<9x1x256xf32, #tpu.memory_space<vmem>>, vector<1x1x256xf32>
    %64 = vector.shape_cast %63 : vector<1x1x256xf32> to vector<1x256xf32>
    %65 = vector.broadcast %64 : vector<1x256xf32> to vector<4x256xf32>
    %66 = arith.mulf %62, %65 : vector<4x256xf32>
    %c6_37 = arith.constant 6 : index
    %c0_38 = arith.constant 0 : index
    %c0_39 = arith.constant 0 : index
    %67 = vector.load %arg3[%c6_37, %c0_38, %c0_39] : memref<9x4x4xf32, #tpu.memory_space<vmem>>, vector<1x4x4xf32>
    %68 = vector.shape_cast %67 : vector<1x4x4xf32> to vector<4x4xf32>
    %cst_40 = arith.constant dense<0.000000e+00> : vector<4x256xf32>
    %69 = tpu.matmul %68, %66, %cst_40 {dimension_numbers = #tpu.dot_dimension_numbers<[1], [0], [0], [1], [0, 0, 1, 1], [], []>} : vector<4x4xf32>, vector<4x256xf32>, vector<4x256xf32> -> vector<4x256xf32>
    %70 = arith.addf %59, %69 : vector<4x256xf32>
    %71 = vector.extract_strided_slice %1 {offsets = [0, 16], sizes = [4, 240], strides = [1, 1]} : vector<4x256xf32> to vector<4x240xf32>
    %72 = vector.extract_strided_slice %1 {offsets = [0, 0], sizes = [4, 16], strides = [1, 1]} : vector<4x256xf32> to vector<4x16xf32>
    %73 = tpu.concatenate %71, %72 in 1 : vector<4x240xf32>, vector<4x16xf32> -> vector<4x256xf32>
    %c7 = arith.constant 7 : index
    %c0_41 = arith.constant 0 : index
    %c0_42 = arith.constant 0 : index
    %74 = vector.load %arg5[%c7, %c0_41, %c0_42] : memref<9x1x256xf32, #tpu.memory_space<vmem>>, vector<1x1x256xf32>
    %75 = vector.shape_cast %74 : vector<1x1x256xf32> to vector<1x256xf32>
    %76 = vector.broadcast %75 : vector<1x256xf32> to vector<4x256xf32>
    %77 = arith.mulf %73, %76 : vector<4x256xf32>
    %c7_43 = arith.constant 7 : index
    %c0_44 = arith.constant 0 : index
    %c0_45 = arith.constant 0 : index
    %78 = vector.load %arg3[%c7_43, %c0_44, %c0_45] : memref<9x4x4xf32, #tpu.memory_space<vmem>>, vector<1x4x4xf32>
    %79 = vector.shape_cast %78 : vector<1x4x4xf32> to vector<4x4xf32>
    %cst_46 = arith.constant dense<0.000000e+00> : vector<4x256xf32>
    %80 = tpu.matmul %79, %77, %cst_46 {dimension_numbers = #tpu.dot_dimension_numbers<[1], [0], [0], [1], [0, 0, 1, 1], [], []>} : vector<4x4xf32>, vector<4x256xf32>, vector<4x256xf32> -> vector<4x256xf32>
    %81 = arith.addf %70, %80 : vector<4x256xf32>
    %82 = vector.extract_strided_slice %1 {offsets = [0, 17], sizes = [4, 239], strides = [1, 1]} : vector<4x256xf32> to vector<4x239xf32>
    %83 = vector.extract_strided_slice %1 {offsets = [0, 0], sizes = [4, 17], strides = [1, 1]} : vector<4x256xf32> to vector<4x17xf32>
    %84 = tpu.concatenate %82, %83 in 1 : vector<4x239xf32>, vector<4x17xf32> -> vector<4x256xf32>
    %c8 = arith.constant 8 : index
    %c0_47 = arith.constant 0 : index
    %c0_48 = arith.constant 0 : index
    %85 = vector.load %arg5[%c8, %c0_47, %c0_48] : memref<9x1x256xf32, #tpu.memory_space<vmem>>, vector<1x1x256xf32>
    %86 = vector.shape_cast %85 : vector<1x1x256xf32> to vector<1x256xf32>
    %87 = vector.broadcast %86 : vector<1x256xf32> to vector<4x256xf32>
    %88 = arith.mulf %84, %87 : vector<4x256xf32>
    %c8_49 = arith.constant 8 : index
    %c0_50 = arith.constant 0 : index
    %c0_51 = arith.constant 0 : index
    %89 = vector.load %arg3[%c8_49, %c0_50, %c0_51] : memref<9x4x4xf32, #tpu.memory_space<vmem>>, vector<1x4x4xf32>
    %90 = vector.shape_cast %89 : vector<1x4x4xf32> to vector<4x4xf32>
    %cst_52 = arith.constant dense<0.000000e+00> : vector<4x256xf32>
    %91 = tpu.matmul %90, %88, %cst_52 {dimension_numbers = #tpu.dot_dimension_numbers<[1], [0], [0], [1], [0, 0, 1, 1], [], []>} : vector<4x4xf32>, vector<4x256xf32>, vector<4x256xf32> -> vector<4x256xf32>
    %92 = arith.addf %81, %91 : vector<4x256xf32>
    %c0_53 = arith.constant 0 : index
    %c0_54 = arith.constant 0 : index
    %93 = vector.load %arg4[%c0_53, %c0_54] : memref<4x1xf32, #tpu.memory_space<vmem>>, vector<4x1xf32>
    %94 = vector.broadcast %93 : vector<4x1xf32> to vector<4x256xf32>
    %95 = arith.addf %92, %94 : vector<4x256xf32>
    %c0_55 = arith.constant 0 : index
    %c0_56 = arith.constant 0 : index
    %c0_57 = arith.constant 0 : index
    %96 = vector.load %arg2[%c0_55, %c0_56, %c0_57] : memref<1x4x256xf32, #tpu.memory_space<vmem>>, vector<1x4x256xf32>
    %97 = vector.shape_cast %96 : vector<1x4x256xf32> to vector<4x256xf32>
    %98 = arith.subf %95, %97 : vector<4x256xf32>
    %99 = arith.mulf %98, %98 : vector<4x256xf32>
    %100 = vector.extract_strided_slice %99 {offsets = [0, 0], sizes = [4, 128], strides = [1, 1]} : vector<4x256xf32> to vector<4x128xf32>
    %101 = vector.extract_strided_slice %99 {offsets = [0, 128], sizes = [4, 128], strides = [1, 1]} : vector<4x256xf32> to vector<4x128xf32>
    %102 = arith.addf %100, %101 : vector<4x128xf32>
    %cst_58 = arith.constant dense<0.000000e+00> : vector<128xf32>
    %103 = vector.multi_reduction <add>, %102, %cst_58 [0] : vector<4x128xf32> to vector<128xf32>
    %104 = vector.shape_cast %103 : vector<128xf32> to vector<1x128xf32>
    %105 = vector.shape_cast %104 : vector<1x128xf32> to vector<1x1x128xf32>
    %c0_59 = arith.constant 0 : index
    %c0_60 = arith.constant 0 : index
    %c0_61 = arith.constant 0 : index
    %106 = vector.load %arg6[%c0_59, %c0_60, %c0_61] : memref<1x1x128xf32, #tpu.memory_space<vmem>>, vector<1x1x128xf32>
    tpu.vector_store %arg6[%c0_59, %c0_60, %c0_61], %105 {strides = array<i32>} : memref<1x1x128xf32, #tpu.memory_space<vmem>>, vector<1x1x128xf32>,
    return
  }
  func.func @transform_0(%arg0: i32) -> (i32, i32, i32) {
    %c0_i32 = arith.constant 0 : i32
    %c0_i32_0 = arith.constant 0 : i32
    %c0_i32_1 = arith.constant 0 : i32
    return %arg0, %c0_i32, %c0_i32_0 : i32, i32, i32
  }
  func.func @transform_1(%arg0: i32) -> (i32, i32, i32) {
    %c0_i32 = arith.constant 0 : i32
    %c0_i32_0 = arith.constant 0 : i32
    %c0_i32_1 = arith.constant 0 : i32
    return %arg0, %c0_i32, %c0_i32_0 : i32, i32, i32
  }
  func.func @transform_2(%arg0: i32) -> (i32, i32, i32) {
    %c0_i32 = arith.constant 0 : i32
    %c0_i32_0 = arith.constant 0 : i32
    %c0_i32_1 = arith.constant 0 : i32
    %c0_i32_2 = arith.constant 0 : i32
    return %c0_i32, %c0_i32_0, %c0_i32_1 : i32, i32, i32
  }
  func.func @transform_3(%arg0: i32) -> (i32, i32) {
    %c0_i32 = arith.constant 0 : i32
    %c0_i32_0 = arith.constant 0 : i32
    %c0_i32_1 = arith.constant 0 : i32
    return %c0_i32, %c0_i32_0 : i32, i32
  }
  func.func @transform_4(%arg0: i32) -> (i32, i32, i32) {
    %c0_i32 = arith.constant 0 : i32
    %c0_i32_0 = arith.constant 0 : i32
    %c0_i32_1 = arith.constant 0 : i32
    %c0_i32_2 = arith.constant 0 : i32
    return %c0_i32, %c0_i32_0, %c0_i32_1 : i32, i32, i32
  }
  func.func @transform_5(%arg0: i32) -> (i32, i32, i32) {
    %c0_i32 = arith.constant 0 : i32
    %c0_i32_0 = arith.constant 0 : i32
    %c0_i32_1 = arith.constant 0 : i32
    return %arg0, %c0_i32, %c0_i32_0 : i32, i32, i32
  }
}

</mosaic_0001>

<llo_original>
// kernel: tpu_custom_call.1
$region0: #{tpu_custom_call.1}
  #allocation0 [shape = 'u32[]', space=smem, size = 0x4, offset = 0x4, fixed_abs, tag = 'smem constant byte address 0x4 - core index']
  #allocation1 [shape = 'u32[144,128]{1,0:T(1,128)}', space=vmem, size = 0x12000, scoped, tag = 'internal scratch']
  %s0 = inlined_call_operand.hbm [shape: f32[8,128], index: 0, kind: input, shape index: {}]
  %s1 = inlined_call_operand.hbm [shape: f32[8,128], index: 1, kind: output, shape index: {}]
  %s2 = sld [smem:[#allocation0]]
  $region18: #{tpu_custom_call.1} parent=0
    _
  %s4 = ssub.s32 1, %s2
  %s5 = scalar_select 0, %s4, %s2
  $region1: #{tpu_custom_call.1} parent=0
    #allocation2 [shape = 'u8[4096]{0}', space=vmem, size = 0x1000, scoped, tag = 'input window, operand 0, single buffered']
    #allocation3 [shape = 's32[1]{0}', space=sflag, size = 0x4, scoped, tag = 'scoped memory for tpu_custom_call.1']
    #allocation4 [shape = 's32[1]{0}', space=sflag, size = 0x4, scoped, tag = 'scoped memory for tpu_custom_call.1']
    #allocation5 [shape = 'u8[4096]{0}', space=vmem, size = 0x1000, scoped, tag = 'output window, operand 0, single buffered']
    %6 = vsyncpa [#allocation3], 0
    %7 = vsyncpa [#allocation4], 0
    // Predicated region
    $region2: #{tpu_custom_call.1} parent=1 // pred_check
      _
    $region3: #{tpu_custom_call.1} parent=1 // pred_check_branch
      %9 = sbr.rel (0) target = $region5
    $region4: #{tpu_custom_call.1} parent=1 // pred_region
      %s11 = ssub.s32 128, 128
      %12 = vsyncadd [#allocation3], %s11
      %s14 = sshll.u32 [#allocation2], 4
      %s15 = int_to_ptr.vmem [resolvable:$true] %s14
      %17 = dma.hbm_to_vmem [thread:$0]  %s0, 128, %s15, [#allocation3]
    $region5: #{tpu_custom_call.1} parent=1 // pred_fallthru
      _
    // Predicated region
    $region6: #{tpu_custom_call.1} parent=1 // pred_check
      _
    $region7: #{tpu_custom_call.1} parent=1 // pred_check_branch
      %19 = sbr.rel (0) target = $region9
    $region8: #{tpu_custom_call.1} parent=1 // pred_region
      %20 = dma.done [#allocation3], 128
    $region9: #{tpu_custom_call.1} parent=1 // pred_fallthru
      _
    %v21 = vld [vmem:[#allocation2] sm:$0xff]
    %22 = vrot.lane.b32.xlu0 %v21, 1
    %v23 = vpop.permute.xlu0 %22
    %24 = vst [vmem:[#allocation5] sm:$0xff] %v23
    // Predicated region
    $region10: #{tpu_custom_call.1} parent=1 // pred_check
      _
    $region11: #{tpu_custom_call.1} parent=1 // pred_check_branch
      %26 = sbr.rel (0) target = $region13
    $region12: #{tpu_custom_call.1} parent=1 // pred_region
      %s28 = ssub.s32 128, 128
      %29 = vsyncadd [#allocation4], %s28
      %s31 = sshll.u32 [#allocation5], 4
      %s32 = int_to_ptr.vmem [resolvable:$true] %s31
      %34 = dma.vmem_to_hbm [thread:$0]  %s32, 128, %s1, [#allocation4]
    $region13: #{tpu_custom_call.1} parent=1 // pred_fallthru
      _
    // Predicated region
    $region14: #{tpu_custom_call.1} parent=1 // pred_check
      _
    $region15: #{tpu_custom_call.1} parent=1 // pred_check_branch
      %36 = sbr.rel (0) target = $region17
    $region16: #{tpu_custom_call.1} parent=1 // pred_region
      %37 = dma.done [#allocation4], 128
    $region17: #{tpu_custom_call.1} parent=1 // pred_fallthru
      _
    %38 = vsyncpa [#allocation3], 1
    %39 = vsyncpa [#allocation4], 1

// kernel: tpu_custom_call.1
$region0: #{tpu_custom_call.1}
  #allocation0 [shape = 'u32[]', space=smem, size = 0x4, offset = 0x4, fixed_abs, tag = 'smem constant byte address 0x4 - core index']
  #allocation1 [shape = 'u32[144,128]{1,0:T(1,128)}', space=vmem, size = 0x12000, scoped, tag = 'internal scratch']
  %s0 = inlined_call_operand.vmem [shape: f32[2,4,256], index: 0, kind: input, shape index: {}]
  %s1 = inlined_call_operand.vmem [shape: f32[2,4,256], index: 1, kind: input, shape index: {}]
  %s2 = inlined_call_operand.vmem [shape: f32[9,4,4], index: 2, kind: input, shape index: {}]
  %s3 = inlined_call_operand.vmem [shape: f32[4,1], index: 3, kind: input, shape index: {}]
  %s4 = inlined_call_operand.vmem [shape: f32[9,1,256], index: 4, kind: input, shape index: {}]
  %s5 = inlined_call_operand.hbm [shape: f32[2,1,128], index: 5, kind: output, shape index: {}]
  %s6 = sld [smem:[#allocation0]]
  $region53: #{tpu_custom_call.1} parent=0
    _
  %s8 = ssub.s32 1, %s6
  %s9 = scalar_select 0, %s8, %s6
  $region1: #{tpu_custom_call.1} parent=0
    #allocation2 [shape = 'u8[1024]{0}', space=vmem, size = 0x400, scoped, tag = 'output window, operand 0']
    #allocation3 [shape = 's32[2]{0}', space=sflag, size = 0x8, scoped, tag = 'scoped memory for tpu_custom_call.1']
    %10 = vsyncpa [#allocation3], 0
    %s11 = scalar_lea.sflag [#allocation3], 1
    %12 = vsyncpa %s11, 0
    loop: start=0, step=1, limit=4
    $region2: #{tpu_custom_call.1} parent=1 // loop_pre_header
      _
    $region3: #{tpu_custom_call.1} parent=1 // loop_header
      %s14 = sphi 0, %s18
      %p15 = scmp.ge.s32.totalorder %s14, 4
      %s24 = sphi 0, %s26
      %s27 = sphi 0, %s24
      %s28 = sphi 0, %s27
      %s44 = sphi 0, %s28
      %s50 = sphi 0, %s52
      %s53 = sphi 0, %s50
      %s54 = sphi 0, %s53
      %s70 = sphi 0, %s54
      %s74 = sphi 0, %s74
      %s76 = sphi 0, %s74
      %s77 = sphi 0, %s76
      %s91 = sphi 0, %s77
      %s95 = sphi 0, %s95
      %s97 = sphi 0, %s95
      %s98 = sphi 0, %s97
      %s112 = sphi 0, %s98
      %s116 = sphi 0, %s116
      %s118 = sphi 0, %s116
      %s119 = sphi 0, %s118
      %s133 = sphi 0, %s119
      %s139 = sphi 0, %s141
      %s142 = sphi 0, %s139
      %s143 = sphi 0, %s142
      %s159 = sphi 0, %s143
    $region4: #{tpu_custom_call.1} parent=1 // loop_header_branch
      %17 = sbr.rel (%p15) target = $region8
    $region5: #{tpu_custom_call.1} parent=1 // loop_body
      %s19 = ssub.s32 %s14, 1
      %s20 = ssub.s32 %s14, 2
      %s21 = sadd.s32 %s14, 1
      %s22 = ssub.s32 %s14, %s21
      %p23 = scmp.eq.s32.totalorder %s22, 0
      %s25 = sadd.s32 %s24, 1
      %s26 = scalar_select %p23, %s24, %s25
      %p29 = pneg %p23
      %p30 = scmp.eq.s32.totalorder %s14, 1
      %p31 = por %p29, %p30
      %p32 = scmp.ne.s32.totalorder %s24, %s27
      %p33 = scmp.eq.s32.totalorder %s14, 0
      %p34 = por %p32, %p33
      %p35 = scmp.ne.s32.totalorder %s24, %s27
      %p36 = scmp.eq.s32.totalorder %s19, 1
      %p37 = por %p35, %p36
      %p38 = scmp.ne.s32.totalorder %s27, %s28
      %p39 = scmp.eq.s32.totalorder %s19, 0
      %p40 = por %p38, %p39
      %p41 = scmp.ne.s32.totalorder %s27, %s28
      %p42 = scmp.eq.s32.totalorder %s20, 1
      %p43 = por %p41, %p42
      %p45 = scmp.ne.s32.totalorder %s28, %s44
      %p46 = scmp.eq.s32.totalorder %s20, 0
      %p47 = por %p45, %p46
      %s48 = ssub.s32 %s14, %s21
      %p49 = scmp.eq.s32.totalorder %s48, 0
      %s51 = sadd.s32 %s50, 1
      %s52 = scalar_select %p49, %s50, %s51
      %p55 = pneg %p49
      %p56 = scmp.eq.s32.totalorder %s14, 1
      %p57 = por %p55, %p56
      %p58 = scmp.ne.s32.totalorder %s50, %s53
      %p59 = scmp.eq.s32.totalorder %s14, 0
      %p60 = por %p58, %p59
      %p61 = scmp.ne.s32.totalorder %s50, %s53
      %p62 = scmp.eq.s32.totalorder %s19, 1
      %p63 = por %p61, %p62
      %p64 = scmp.ne.s32.totalorder %s53, %s54
      %p65 = scmp.eq.s32.totalorder %s19, 0
      %p66 = por %p64, %p65
      %p67 = scmp.ne.s32.totalorder %s53, %s54
      %p68 = scmp.eq.s32.totalorder %s20, 1
      %p69 = por %p67, %p68
      %p71 = scmp.ne.s32.totalorder %s54, %s70
      %p72 = scmp.eq.s32.totalorder %s20, 0
      %p73 = por %p71, %p72
      %s75 = sadd.s32 %s74, 1
      %p78 = scmp.eq.s32.totalorder %s14, 1
      %p79 = scmp.ne.s32.totalorder %s74, %s76
      %p80 = scmp.eq.s32.totalorder %s14, 0
      %p81 = por %p79, %p80
      %p82 = scmp.ne.s32.totalorder %s74, %s76
      %p83 = scmp.eq.s32.totalorder %s19, 1
      %p84 = por %p82, %p83
      %p85 = scmp.ne.s32.totalorder %s76, %s77
      %p86 = scmp.eq.s32.totalorder %s19, 0
      %p87 = por %p85, %p86
      %p88 = scmp.ne.s32.totalorder %s76, %s77
      %p89 = scmp.eq.s32.totalorder %s20, 1
      %p90 = por %p88, %p89
      %p92 = scmp.ne.s32.totalorder %s77, %s91
      %p93 = scmp.eq.s32.totalorder %s20, 0
      %p94 = por %p92, %p93
      %s96 = sadd.s32 %s95, 1
      %p99 = scmp.eq.s32.totalorder %s14, 1
      %p100 = scmp.ne.s32.totalorder %s95, %s97
      %p101 = scmp.eq.s32.totalorder %s14, 0
      %p102 = por %p100, %p101
      %p103 = scmp.ne.s32.totalorder %s95, %s97
      %p104 = scmp.eq.s32.totalorder %s19, 1
      %p105 = por %p103, %p104
      %p106 = scmp.ne.s32.totalorder %s97, %s98
      %p107 = scmp.eq.s32.totalorder %s19, 0
      %p108 = por %p106, %p107
      %p109 = scmp.ne.s32.totalorder %s97, %s98
      %p110 = scmp.eq.s32.totalorder %s20, 1
      %p111 = por %p109, %p110
      %p113 = scmp.ne.s32.totalorder %s98, %s112
      %p114 = scmp.eq.s32.totalorder %s20, 0
      %p115 = por %p113, %p114
      %s117 = sadd.s32 %s116, 1
      %p120 = scmp.eq.s32.totalorder %s14, 1
      %p121 = scmp.ne.s32.totalorder %s116, %s118
      %p122 = scmp.eq.s32.totalorder %s14, 0
      %p123 = por %p121, %p122
      %p124 = scmp.ne.s32.totalorder %s116, %s118
      %p125 = scmp.eq.s32.totalorder %s19, 1
      %p126 = por %p124, %p125
      %p127 = scmp.ne.s32.totalorder %s118, %s119
      %p128 = scmp.eq.s32.totalorder %s19, 0
      %p129 = por %p127, %p128
      %p130 = scmp.ne.s32.totalorder %s118, %s119
      %p131 = scmp.eq.s32.totalorder %s20, 1
      %p132 = por %p130, %p131
      %p134 = scmp.ne.s32.totalorder %s119, %s133
      %p135 = scmp.eq.s32.totalorder %s20, 0
      %p136 = por %p134, %p135
      %s137 = ssub.s32 %s14, %s21
      %p138 = scmp.eq.s32.totalorder %s137, 0
      %s140 = sadd.s32 %s139, 1
      %s141 = scalar_select %p138, %s139, %s140
      %p144 = pneg %p138
      %p145 = scmp.eq.s32.totalorder %s14, 1
      %p146 = por %p144, %p145
      %p147 = scmp.ne.s32.totalorder %s139, %s142
      %p148 = scmp.eq.s32.totalorder %s14, 0
      %p149 = por %p147, %p148
      %p150 = scmp.ne.s32.totalorder %s139, %s142
      %p151 = scmp.eq.s32.totalorder %s19, 1
      %p152 = por %p150, %p151
      %p153 = scmp.ne.s32.totalorder %s142, %s143
      %p154 = scmp.eq.s32.totalorder %s19, 0
      %p155 = por %p153, %p154
      %p156 = scmp.ne.s32.totalorder %s142, %s143
      %p157 = scmp.eq.s32.totalorder %s20, 1
      %p158 = por %p156, %p157
      %p160 = scmp.ne.s32.totalorder %s143, %s159
      %p161 = scmp.eq.s32.totalorder %s20, 0
      %p162 = por %p160, %p161
      %p163 = scmp.le.s32.totalorder 1, %s14
      %p164 = scmp.lt.s32.totalorder %s14, 3
      %p165 = pnand %p163, %p164
      %p166 = pneg %p165
      // Predicated region
      $region9: #{tpu_custom_call.1} parent=5 // pred_check
        _
      $region10: #{tpu_custom_call.1} parent=5 // pred_check_branch
        %168 = sbr.rel (%p165) target = $region12
      $region11: #{tpu_custom_call.1} parent=5 // pred_region
        %s169 = ssub.s32 %s14, 1
        // Predicated region
        $region13: #{tpu_custom_call.1} parent=11 // pred_check
          %p170 = pneg %p87
        $region14: #{tpu_custom_call.1} parent=11 // pred_check_branch
          %172 = sbr.rel (%p170) target = $region16
        $region15: #{tpu_custom_call.1} parent=11 // pred_region
          _
        $region16: #{tpu_custom_call.1} parent=11 // pred_fallthru
          _
        // Predicated region
        $region17: #{tpu_custom_call.1} parent=11 // pred_check
          %p173 = pneg %p108
        $region18: #{tpu_custom_call.1} parent=11 // pred_check_branch
          %175 = sbr.rel (%p173) target = $region20
        $region19: #{tpu_custom_call.1} parent=11 // pred_region
          _
        $region20: #{tpu_custom_call.1} parent=11 // pred_fallthru
          _
        // Predicated region
        $region21: #{tpu_custom_call.1} parent=11 // pred_check
          %p176 = pneg %p129
        $region22: #{tpu_custom_call.1} parent=11 // pred_check_branch
          %178 = sbr.rel (%p176) target = $region24
        $region23: #{tpu_custom_call.1} parent=11 // pred_region
          _
        $region24: #{tpu_custom_call.1} parent=11 // pred_fallthru
          _
      $region12: #{tpu_custom_call.1} parent=5 // pred_fallthru
        _
      %p179 = scmp.lt.s32.totalorder %s14, 2
      // Predicated region
      $region25: #{tpu_custom_call.1} parent=5 // pred_check
        %p180 = pneg %p179
      $region26: #{tpu_custom_call.1} parent=5 // pred_check_branch
        %182 = sbr.rel (%p180) target = $region28
      $region27: #{tpu_custom_call.1} parent=5 // pred_region
        // Predicated region
        $region29: #{tpu_custom_call.1} parent=27 // pred_check
          %p183 = pneg %p34
        $region30: #{tpu_custom_call.1} parent=27 // pred_check_branch
          %185 = sbr.rel (%p183) target = $region32
        $region31: #{tpu_custom_call.1} parent=27 // pred_region
          %p186 = scmp.lt.s32.totalorder %s14, 1
          %s187 = scalar_select %p186, %s14, 1
          %s188 = smul.addr %s187, 2
          %s189 = smul.addr %s188, 4
          %s190 = scalar_lea.vmem %s0, %s189
        $region32: #{tpu_custom_call.1} parent=27 // pred_fallthru
          _
        // Predicated region
        $region33: #{tpu_custom_call.1} parent=27 // pred_check
          %p191 = pneg %p60
        $region34: #{tpu_custom_call.1} parent=27 // pred_check_branch
          %193 = sbr.rel (%p191) target = $region36
        $region35: #{tpu_custom_call.1} parent=27 // pred_region
          %p194 = scmp.lt.s32.totalorder %s14, 1
          %s195 = scalar_select %p194, %s14, 1
          %s196 = smul.addr %s195, 2
          %s197 = smul.addr %s196, 4
          %s198 = scalar_lea.vmem %s1, %s197
        $region36: #{tpu_custom_call.1} parent=27 // pred_fallthru
          _
      $region28: #{tpu_custom_call.1} parent=5 // pred_fallthru
        _
      %p199 = scmp.le.s32.totalorder 1, %s14
      %p200 = scmp.lt.s32.totalorder %s14, 3
      %p201 = pnand %p199, %p200
      %p202 = pneg %p201
      // Predicated region
      $region37: #{tpu_custom_call.1} parent=5 // pred_check
        _
      $region38: #{tpu_custom_call.1} parent=5 // pred_check_branch
        %204 = sbr.rel (%p201) target = $region40
      $region39: #{tpu_custom_call.1} parent=5 // pred_region
        %s205 = ssub.s32 %s14, 1
        %p206 = scmp.lt.s32.totalorder %s19, 1
        %s207 = scalar_select %p206, %s19, 1
        %s208 = smul.addr %s207, 2
        %s209 = smul.addr %s208, 4
        %s210 = scalar_lea.vmem %s0, %s209
        %p211 = pneg %p40
        %p212 = pneg %p37
        %p213 = scmp.lt.s32.totalorder %s19, 1
        %s214 = scalar_select %p213, %s19, 1
        %s215 = smul.addr %s214, 2
        %s216 = smul.addr %s215, 4
        %s217 = scalar_lea.vmem %s1, %s216
        %p218 = pneg %p66
        %p219 = pneg %p63
        %p220 = pneg %p87
        %p221 = pneg %p84
        %p222 = pneg %p108
        %p223 = pneg %p105
        %p224 = pneg %p129
        %p225 = pneg %p126
        %p226 = pneg %p155
        %p227 = pneg %p152
        %s228 = sand.u32 %s142, 1
        %s229 = scalar_lea.sflag [#allocation3], %s228
        %s230 = sand.u32 %s142, 1
        %s231 = scalar_lea.vmem [#allocation2], %s230
        %p232 = scmp.lt.s32.totalorder %s19, 1
        %s233 = scalar_select %p232, %s19, 1
        %s234 = smul.addr %s233, 2
        %s235 = smul.addr %s234, 4
        %s236 = scalar_lea.vmem %s0, %s235
        %p237 = scmp.lt.s32.totalorder %s19, 1
        %s238 = scalar_select %p237, %s19, 1
        %s239 = smul.addr %s238, 2
        %s240 = smul.addr %s239, 4
        %s241 = scalar_lea.vmem %s1, %s240
        %v242 = vld [vmem:[%s236] sm:$0xff]
        %v244 = vcombine.high %v242, %v242
        %245 = vrot.lane.b32.xlu0 %v244, 17
        %v246 = vpop.permute.xlu0 %245
        %248 = vrot.lane.b32.xlu0 %v242, 17
        %v249 = vpop.permute.xlu0 %248
        %vm250 = vcmask 138240
        %v251 = vsel %vm250, %v249, %v246
        %v254 = vsel %vm250, %v246, %v249
        %v255 = vld [vmem:[%s4] sm:$0x3]
        %v257 = vlaneseq
        %v258 = vshrl.u32 %v257, 7
        %v259 = vsub.s32 0, %v258
        %v260 = vrot.slane %v255, %v259
        %v261 = vlaneseq
        %v262 = vshrl.u32 %v261, 7
        %v263 = vsub.s32 1, %v262
        %v264 = vrot.slane %v255, %v263
        %v267 = vmul.f32 %v254, %v260
        %v268 = vmul.f32 %v251, %v264
        %v269 = vld [vmem:[%s2] sm:$0xf]
        %270 = vrot.lane.b32.xlu0 %v244, 16
        %v271 = vpop.permute.xlu0 %270
        %273 = vrot.lane.b32.xlu0 %v242, 16
        %v274 = vpop.permute.xlu0 %273
        %vm275 = vcmask 130048
        %v276 = vsel %vm275, %v274, %v271
        %v279 = vsel %vm275, %v271, %v274
        %s280 = scalar_lea.vmem %s4, 2
        %v281 = vld [vmem:[%s280] sm:$0x3]
        %v283 = vlaneseq
        %v284 = vshrl.u32 %v283, 7
        %v285 = vsub.s32 0, %v284
        %v286 = vrot.slane %v281, %v285
        %v287 = vlaneseq
        %v288 = vshrl.u32 %v287, 7
        %v289 = vsub.s32 1, %v288
        %v290 = vrot.slane %v281, %v289
        %v293 = vmul.f32 %v279, %v286
        %v294 = vmul.f32 %v276, %v290
        %s295 = scalar_lea.vmem %s2, 4
        %v296 = vld [vmem:[%s295] sm:$0xf]
        %vm297 = vcmask 31744
        %v299 = vsel %vm297, %v296, 0
        %vm301 = vcmask 1043456
        %v303 = vsel %vm301, %v293, 0
        %v306 = vsel %vm301, %v294, 0
        %308 = vmatprep.subr.mxu0 %v306
        %309 = vmatpush1.msra.mxu0 %v303
        %310 = vmatprep.subr.mxu0 0.0
        %311 = vmatpush1.msra.mxu0 0.0
        %312 = vmatprep.subr.mxu0 0.0
        %313 = vmatpush1.msra.mxu0 0.0
        %314 = vmatprep.subr.mxu0 0.0
        %315 = vmatpush1.msra.mxu0 0.0
        %316 = vmatprep.subr.mxu0 0.0
        %317 = vmatpush1.msra.mxu0 0.0
        %318 = vmatprep.subr.mxu0 0.0
        %319 = vmatpush1.msra.mxu0 0.0
        %320 = vmatprep.subr.mxu0 0.0
        %321 = vmatpush1.msra.mxu0 0.0
        %322 = vmatprep.subr.mxu0 0.0
        %323 = vmatpush1.msra.mxu0 0.0
        %324 = vmatprep.subr.mxu0 0.0
        %325 = vmatpush1.msra.mxu0 0.0
        %326 = vmatprep.subr.mxu0 0.0
        %327 = vmatpush1.msra.mxu0 0.0
        %328 = vmatprep.subr.mxu0 0.0
        %329 = vmatpush1.msra.mxu0 0.0
        %330 = vmatprep.subr.mxu0 0.0
        %331 = vmatpush1.msra.mxu0 0.0
        %332 = vmatprep.subr.mxu0 0.0
        %333 = vmatpush1.msra.mxu0 0.0
        %334 = vmatprep.subr.mxu0 0.0
        %335 = vmatpush1.msra.mxu0 0.0
        %336 = vmatprep.subr.mxu0 0.0
        %337 = vmatpush1.msra.mxu0 0.0
        %338 = vmatprep.subr.mxu0 0.0
        %339 = vmatpush1.msra.mxu0 0.0
        %340 = vmatprep.subr.mxu0 0.0
        %341 = vmatpush1.msra.mxu0 0.0
        %342 = vmatprep.subr.mxu0 0.0
        %343 = vmatpush1.msra.mxu0 0.0
        %344 = vmatprep.subr.mxu0 0.0
        %345 = vmatpush1.msra.mxu0 0.0
        %346 = vmatprep.subr.mxu0 0.0
        %347 = vmatpush1.msra.mxu0 0.0
        %348 = vmatprep.subr.mxu0 0.0
        %349 = vmatpush1.msra.mxu0 0.0
        %350 = vmatprep.subr.mxu0 0.0
        %351 = vmatpush1.msra.mxu0 0.0
        %352 = vmatprep.subr.mxu0 0.0
        %353 = vmatpush1.msra.mxu0 0.0
        %354 = vmatprep.subr.mxu0 0.0
        %355 = vmatpush1.msra.mxu0 0.0
        %356 = vmatprep.subr.mxu0 0.0
        %357 = vmatpush1.msra.mxu0 0.0
        %358 = vmatprep.subr.mxu0 0.0
        %359 = vmatpush1.msra.mxu0 0.0
        %360 = vmatprep.subr.mxu0 0.0
        %361 = vmatpush1.msra.mxu0 0.0
        %362 = vmatprep.subr.mxu0 0.0
        %363 = vmatpush1.msra.mxu0 0.0
        %364 = vmatprep.subr.mxu0 0.0
        %365 = vmatpush1.msra.mxu0 0.0
        %366 = vmatprep.subr.mxu0 0.0
        %367 = vmatpush1.msra.mxu0 0.0
        %368 = vmatprep.subr.mxu0 0.0
        %369 = vmatpush1.msra.mxu0 0.0
        %370 = vmatprep.subr.mxu0 0.0
        %371 = vmatpush1.msra.mxu0 0.0
        %372 = vmatprep.mubr.f32.mxu0 0.0
        %373 = vmatmul.mubr.f32.gmra.mrb[0].mxu0 %v299
        %v374 = vpop.f32.mrb[0].mxu0
        %v375 = vadd.f32 0.0, %v374
        %v376 = vpop.f32.mrb[0].mxu0
        %v377 = vadd.f32 0.0, %v376
        %378 = vdwg.mxu0
        %v380 = vsel %vm297, %v269, 0
        %v383 = vsel %vm301, %v267, 0
        %v386 = vsel %vm301, %v268, 0
        %388 = vmatprep.subr.mxu0 %v386
        %389 = vmatpush1.msra.mxu0 %v383
        %390 = vmatprep.subr.mxu0 0.0
        %391 = vmatpush1.msra.mxu0 0.0
        %392 = vmatprep.subr.mxu0 0.0
        %393 = vmatpush1.msra.mxu0 0.0
        %394 = vmatprep.subr.mxu0 0.0
        %395 = vmatpush1.msra.mxu0 0.0
        %396 = vmatprep.subr.mxu0 0.0
        %397 = vmatpush1.msra.mxu0 0.0
        %398 = vmatprep.subr.mxu0 0.0
        %399 = vmatpush1.msra.mxu0 0.0
        %400 = vmatprep.subr.mxu0 0.0
        %401 = vmatpush1.msra.mxu0 0.0
        %402 = vmatprep.subr.mxu0 0.0
        %403 = vmatpush1.msra.mxu0 0.0
        %404 = vmatprep.subr.mxu0 0.0
        %405 = vmatpush1.msra.mxu0 0.0
        %406 = vmatprep.subr.mxu0 0.0
        %407 = vmatpush1.msra.mxu0 0.0
        %408 = vmatprep.subr.mxu0 0.0
        %409 = vmatpush1.msra.mxu0 0.0
        %410 = vmatprep.subr.mxu0 0.0
        %411 = vmatpush1.msra.mxu0 0.0
        %412 = vmatprep.subr.mxu0 0.0
        %413 = vmatpush1.msra.mxu0 0.0
        %414 = vmatprep.subr.mxu0 0.0
        %415 = vmatpush1.msra.mxu0 0.0
        %416 = vmatprep.subr.mxu0 0.0
        %417 = vmatpush1.msra.mxu0 0.0
        %418 = vmatprep.subr.mxu0 0.0
        %419 = vmatpush1.msra.mxu0 0.0
        %420 = vmatprep.subr.mxu0 0.0
        %421 = vmatpush1.msra.mxu0 0.0
        %422 = vmatprep.subr.mxu0 0.0
        %423 = vmatpush1.msra.mxu0 0.0
        %424 = vmatprep.subr.mxu0 0.0
        %425 = vmatpush1.msra.mxu0 0.0
        %426 = vmatprep.subr.mxu0 0.0
        %427 = vmatpush1.msra.mxu0 0.0
        %428 = vmatprep.subr.mxu0 0.0
        %429 = vmatpush1.msra.mxu0 0.0
        %430 = vmatprep.subr.mxu0 0.0
        %431 = vmatpush1.msra.mxu0 0.0
        %432 = vmatprep.subr.mxu0 0.0
        %433 = vmatpush1.msra.mxu0 0.0
        %434 = vmatprep.subr.mxu0 0.0
        %435 = vmatpush1.msra.mxu0 0.0
        %436 = vmatprep.subr.mxu0 0.0
        %437 = vmatpush1.msra.mxu0 0.0
        %438 = vmatprep.subr.mxu0 0.0
        %439 = vmatpush1.msra.mxu0 0.0
        %440 = vmatprep.subr.mxu0 0.0
        %441 = vmatpush1.msra.mxu0 0.0
        %442 = vmatprep.subr.mxu0 0.0
        %443 = vmatpush1.msra.mxu0 0.0
        %444 = vmatprep.subr.mxu0 0.0
        %445 = vmatpush1.msra.mxu0 0.0
        %446 = vmatprep.subr.mxu0 0.0
        %447 = vmatpush1.msra.mxu0 0.0
        %448 = vmatprep.subr.mxu0 0.0
        %449 = vmatpush1.msra.mxu0 0.0
        %450 = vmatprep.subr.mxu0 0.0
        %451 = vmatpush1.msra.mxu0 0.0
        %452 = vmatprep.mubr.f32.mxu0 0.0
        %453 = vmatmul.mubr.f32.gmra.mrb[0].mxu0 %v380
        %v454 = vpop.f32.mrb[0].mxu0
        %v455 = vadd.f32 %v375, %v454
        %v456 = vpop.f32.mrb[0].mxu0
        %v457 = vadd.f32 %v377, %v456
        %458 = vdwg.mxu0
        %459 = vrot.lane.b32.xlu0 %v244, 15
        %v460 = vpop.permute.xlu0 %459
        %462 = vrot.lane.b32.xlu0 %v242, 15
        %v463 = vpop.permute.xlu0 %462
        %vm464 = vcmask 121856
        %v465 = vsel %vm464, %v463, %v460
        %v468 = vsel %vm464, %v460, %v463
        %s469 = scalar_lea.vmem %s4, 4
        %v470 = vld [vmem:[%s469] sm:$0x3]
        %v472 = vlaneseq
        %v473 = vshrl.u32 %v472, 7
        %v474 = vsub.s32 0, %v473
        %v475 = vrot.slane %v470, %v474
        %v476 = vlaneseq
        %v477 = vshrl.u32 %v476, 7
        %v478 = vsub.s32 1, %v477
        %v479 = vrot.slane %v470, %v478
        %v482 = vmul.f32 %v468, %v475
        %v483 = vmul.f32 %v465, %v479
        %s484 = scalar_lea.vmem %s2, 8
        %v485 = vld [vmem:[%s484] sm:$0xf]
        %v487 = vsel %vm297, %v485, 0
        %v490 = vsel %vm301, %v482, 0
        %v493 = vsel %vm301, %v483, 0
        %495 = vmatprep.subr.mxu0 %v493
        %496 = vmatpush1.msra.mxu0 %v490
        %497 = vmatprep.subr.mxu0 0.0
        %498 = vmatpush1.msra.mxu0 0.0
        %499 = vmatprep.subr.mxu0 0.0
        %500 = vmatpush1.msra.mxu0 0.0
        %501 = vmatprep.subr.mxu0 0.0
        %502 = vmatpush1.msra.mxu0 0.0
        %503 = vmatprep.subr.mxu0 0.0
        %504 = vmatpush1.msra.mxu0 0.0
        %505 = vmatprep.subr.mxu0 0.0
        %506 = vmatpush1.msra.mxu0 0.0
        %507 = vmatprep.subr.mxu0 0.0
        %508 = vmatpush1.msra.mxu0 0.0
        %509 = vmatprep.subr.mxu0 0.0
        %510 = vmatpush1.msra.mxu0 0.0
        %511 = vmatprep.subr.mxu0 0.0
        %512 = vmatpush1.msra.mxu0 0.0
        %513 = vmatprep.subr.mxu0 0.0
        %514 = vmatpush1.msra.mxu0 0.0
        %515 = vmatprep.subr.mxu0 0.0
        %516 = vmatpush1.msra.mxu0 0.0
        %517 = vmatprep.subr.mxu0 0.0
        %518 = vmatpush1.msra.mxu0 0.0
        %519 = vmatprep.subr.mxu0 0.0
        %520 = vmatpush1.msra.mxu0 0.0
        %521 = vmatprep.subr.mxu0 0.0
        %522 = vmatpush1.msra.mxu0 0.0
        %523 = vmatprep.subr.mxu0 0.0
        %524 = vmatpush1.msra.mxu0 0.0
        %525 = vmatprep.subr.mxu0 0.0
        %526 = vmatpush1.msra.mxu0 0.0
        %527 = vmatprep.subr.mxu0 0.0
        %528 = vmatpush1.msra.mxu0 0.0
        %529 = vmatprep.subr.mxu0 0.0
        %530 = vmatpush1.msra.mxu0 0.0
        %531 = vmatprep.subr.mxu0 0.0
        %532 = vmatpush1.msra.mxu0 0.0
        %533 = vmatprep.subr.mxu0 0.0
        %534 = vmatpush1.msra.mxu0 0.0
        %535 = vmatprep.subr.mxu0 0.0
        %536 = vmatpush1.msra.mxu0 0.0
        %537 = vmatprep.subr.mxu0 0.0
        %538 = vmatpush1.msra.mxu0 0.0
        %539 = vmatprep.subr.mxu0 0.0
        %540 = vmatpush1.msra.mxu0 0.0
        %541 = vmatprep.subr.mxu0 0.0
        %542 = vmatpush1.msra.mxu0 0.0
        %543 = vmatprep.subr.mxu0 0.0
        %544 = vmatpush1.msra.mxu0 0.0
        %545 = vmatprep.subr.mxu0 0.0
        %546 = vmatpush1.msra.mxu0 0.0
        %547 = vmatprep.subr.mxu0 0.0
        %548 = vmatpush1.msra.mxu0 0.0
        %549 = vmatprep.subr.mxu0 0.0
        %550 = vmatpush1.msra.mxu0 0.0
        %551 = vmatprep.subr.mxu0 0.0
        %552 = vmatpush1.msra.mxu0 0.0
        %553 = vmatprep.subr.mxu0 0.0
        %554 = vmatpush1.msra.mxu0 0.0
        %555 = vmatprep.subr.mxu0 0.0
        %556 = vmatpush1.msra.mxu0 0.0
        %557 = vmatprep.subr.mxu0 0.0
        %558 = vmatpush1.msra.mxu0 0.0
        %559 = vmatprep.mubr.f32.mxu0 0.0
        %560 = vmatmul.mubr.f32.gmra.mrb[0].mxu0 %v487
        %v561 = vpop.f32.mrb[0].mxu0
        %v562 = vadd.f32 0.0, %v561
        %v563 = vpop.f32.mrb[0].mxu0
        %v564 = vadd.f32 0.0, %v563
        %565 = vdwg.mxu0
        %v566 = vadd.f32 %v455, %v562
        %v567 = vadd.f32 %v457, %v564
        %568 = vrot.lane.b32.xlu0 %v244, 1
        %v569 = vpop.permute.xlu0 %568
        %571 = vrot.lane.b32.xlu0 %v242, 1
        %v572 = vpop.permute.xlu0 %571
        %vm573 = vcmask 7168
        %v574 = vsel %vm573, %v572, %v569
        %v577 = vsel %vm573, %v569, %v572
        %s578 = scalar_lea.vmem %s4, 6
        %v579 = vld [vmem:[%s578] sm:$0x3]
        %v581 = vlaneseq
        %v582 = vshrl.u32 %v581, 7
        %v583 = vsub.s32 0, %v582
        %v584 = vrot.slane %v579, %v583
        %v585 = vlaneseq
        %v586 = vshrl.u32 %v585, 7
        %v587 = vsub.s32 1, %v586
        %v588 = vrot.slane %v579, %v587
        %v591 = vmul.f32 %v577, %v584
        %v592 = vmul.f32 %v574, %v588
        %s593 = scalar_lea.vmem %s2, 12
        %v594 = vld [vmem:[%s593] sm:$0xf]
        %v596 = vsel %vm297, %v594, 0
        %v599 = vsel %vm301, %v591, 0
        %v602 = vsel %vm301, %v592, 0
        %604 = vmatprep.subr.mxu0 %v602
        %605 = vmatpush1.msra.mxu0 %v599
        %606 = vmatprep.subr.mxu0 0.0
        %607 = vmatpush1.msra.mxu0 0.0
        %608 = vmatprep.subr.mxu0 0.0
        %609 = vmatpush1.msra.mxu0 0.0
        %610 = vmatprep.subr.mxu0 0.0
        %611 = vmatpush1.msra.mxu0 0.0
        %612 = vmatprep.subr.mxu0 0.0
        %613 = vmatpush1.msra.mxu0 0.0
        %614 = vmatprep.subr.mxu0 0.0
        %615 = vmatpush1.msra.mxu0 0.0
        %616 = vmatprep.subr.mxu0 0.0
        %617 = vmatpush1.msra.mxu0 0.0
        %618 = vmatprep.subr.mxu0 0.0
        %619 = vmatpush1.msra.mxu0 0.0
        %620 = vmatprep.subr.mxu0 0.0
        %621 = vmatpush1.msra.mxu0 0.0
        %622 = vmatprep.subr.mxu0 0.0
        %623 = vmatpush1.msra.mxu0 0.0
        %624 = vmatprep.subr.mxu0 0.0
        %625 = vmatpush1.msra.mxu0 0.0
        %626 = vmatprep.subr.mxu0 0.0
        %627 = vmatpush1.msra.mxu0 0.0
        %628 = vmatprep.subr.mxu0 0.0
        %629 = vmatpush1.msra.mxu0 0.0
        %630 = vmatprep.subr.mxu0 0.0
        %631 = vmatpush1.msra.mxu0 0.0
        %632 = vmatprep.subr.mxu0 0.0
        %633 = vmatpush1.msra.mxu0 0.0
        %634 = vmatprep.subr.mxu0 0.0
        %635 = vmatpush1.msra.mxu0 0.0
        %636 = vmatprep.subr.mxu0 0.0
        %637 = vmatpush1.msra.mxu0 0.0
        %638 = vmatprep.subr.mxu0 0.0
        %639 = vmatpush1.msra.mxu0 0.0
        %640 = vmatprep.subr.mxu0 0.0
        %641 = vmatpush1.msra.mxu0 0.0
        %642 = vmatprep.subr.mxu0 0.0
        %643 = vmatpush1.msra.mxu0 0.0
        %644 = vmatprep.subr.mxu0 0.0
        %645 = vmatpush1.msra.mxu0 0.0
        %646 = vmatprep.subr.mxu0 0.0
        %647 = vmatpush1.msra.mxu0 0.0
        %648 = vmatprep.subr.mxu0 0.0
        %649 = vmatpush1.msra.mxu0 0.0
        %650 = vmatprep.subr.mxu0 0.0
        %651 = vmatpush1.msra.mxu0 0.0
        %652 = vmatprep.subr.mxu0 0.0
        %653 = vmatpush1.msra.mxu0 0.0
        %654 = vmatprep.subr.mxu0 0.0
        %655 = vmatpush1.msra.mxu0 0.0
        %656 = vmatprep.subr.mxu0 0.0
        %657 = vmatpush1.msra.mxu0 0.0
        %658 = vmatprep.subr.mxu0 0.0
        %659 = vmatpush1.msra.mxu0 0.0
        %660 = vmatprep.subr.mxu0 0.0
        %661 = vmatpush1.msra.mxu0 0.0
        %662 = vmatprep.subr.mxu0 0.0
        %663 = vmatpush1.msra.mxu0 0.0
        %664 = vmatprep.subr.mxu0 0.0
        %665 = vmatpush1.msra.mxu0 0.0
        %666 = vmatprep.subr.mxu0 0.0
        %667 = vmatpush1.msra.mxu0 0.0
        %668 = vmatprep.mubr.f32.mxu0 0.0
        %669 = vmatmul.mubr.f32.gmra.mrb[0].mxu0 %v596
        %v670 = vpop.f32.mrb[0].mxu0
        %v671 = vadd.f32 0.0, %v670
        %v672 = vpop.f32.mrb[0].mxu0
        %v673 = vadd.f32 0.0, %v672
        %674 = vdwg.mxu0
        %v675 = vadd.f32 %v566, %v671
        %v676 = vadd.f32 %v567, %v673
        %s677 = scalar_lea.vmem %s2, 16
        %v678 = vld [vmem:[%s677] sm:$0xf]
        %v680 = vsel %vm297, %v678, 0
        %v682 = vsel %vm301, %v242, 0
        %v684 = vsel %vm301, %v244, 0
        %686 = vmatprep.subr.mxu0 %v684
        %687 = vmatpush1.msra.mxu0 %v682
        %688 = vmatprep.subr.mxu0 0.0
        %689 = vmatpush1.msra.mxu0 0.0
        %690 = vmatprep.subr.mxu0 0.0
        %691 = vmatpush1.msra.mxu0 0.0
        %692 = vmatprep.subr.mxu0 0.0
        %693 = vmatpush1.msra.mxu0 0.0
        %694 = vmatprep.subr.mxu0 0.0
        %695 = vmatpush1.msra.mxu0 0.0
        %696 = vmatprep.subr.mxu0 0.0
        %697 = vmatpush1.msra.mxu0 0.0
        %698 = vmatprep.subr.mxu0 0.0
        %699 = vmatpush1.msra.mxu0 0.0
        %700 = vmatprep.subr.mxu0 0.0
        %701 = vmatpush1.msra.mxu0 0.0
        %702 = vmatprep.subr.mxu0 0.0
        %703 = vmatpush1.msra.mxu0 0.0
        %704 = vmatprep.subr.mxu0 0.0
        %705 = vmatpush1.msra.mxu0 0.0
        %706 = vmatprep.subr.mxu0 0.0
        %707 = vmatpush1.msra.mxu0 0.0
        %708 = vmatprep.subr.mxu0 0.0
        %709 = vmatpush1.msra.mxu0 0.0
        %710 = vmatprep.subr.mxu0 0.0
        %711 = vmatpush1.msra.mxu0 0.0
        %712 = vmatprep.subr.mxu0 0.0
        %713 = vmatpush1.msra.mxu0 0.0
        %714 = vmatprep.subr.mxu0 0.0
        %715 = vmatpush1.msra.mxu0 0.0
        %716 = vmatprep.subr.mxu0 0.0
        %717 = vmatpush1.msra.mxu0 0.0
        %718 = vmatprep.subr.mxu0 0.0
        %719 = vmatpush1.msra.mxu0 0.0
        %720 = vmatprep.subr.mxu0 0.0
        %721 = vmatpush1.msra.mxu0 0.0
        %722 = vmatprep.subr.mxu0 0.0
        %723 = vmatpush1.msra.mxu0 0.0
        %724 = vmatprep.subr.mxu0 0.0
        %725 = vmatpush1.msra.mxu0 0.0
        %726 = vmatprep.subr.mxu0 0.0
        %727 = vmatpush1.msra.mxu0 0.0
        %728 = vmatprep.subr.mxu0 0.0
        %729 = vmatpush1.msra.mxu0 0.0
        %730 = vmatprep.subr.mxu0 0.0
        %731 = vmatpush1.msra.mxu0 0.0
        %732 = vmatprep.subr.mxu0 0.0
        %733 = vmatpush1.msra.mxu0 0.0
        %734 = vmatprep.subr.mxu0 0.0
        %735 = vmatpush1.msra.mxu0 0.0
        %736 = vmatprep.subr.mxu0 0.0
        %737 = vmatpush1.msra.mxu0 0.0
        %738 = vmatprep.subr.mxu0 0.0
        %739 = vmatpush1.msra.mxu0 0.0
        %740 = vmatprep.subr.mxu0 0.0
        %741 = vmatpush1.msra.mxu0 0.0
        %742 = vmatprep.subr.mxu0 0.0
        %743 = vmatpush1.msra.mxu0 0.0
        %744 = vmatprep.subr.mxu0 0.0
        %745 = vmatpush1.msra.mxu0 0.0
        %746 = vmatprep.subr.mxu0 0.0
        %747 = vmatpush1.msra.mxu0 0.0
        %748 = vmatprep.subr.mxu0 0.0
        %749 = vmatpush1.msra.mxu0 0.0
        %750 = vmatprep.mubr.f32.mxu0 0.0
        %751 = vmatmul.mubr.f32.gmra.mrb[0].mxu0 %v680
        %v752 = vpop.f32.mrb[0].mxu0
        %v753 = vadd.f32 0.0, %v752
        %v754 = vpop.f32.mrb[0].mxu0
        %v755 = vadd.f32 0.0, %v754
        %756 = vdwg.mxu0
        %v757 = vadd.f32 %v675, %v753
        %v758 = vadd.f32 %v676, %v755
        %759 = vrot.lane.b32.xlu0 %v242, 127
        %v760 = vpop.permute.xlu0 %759
        %761 = vrot.lane.b32.xlu0 %v244, 127
        %v762 = vpop.permute.xlu0 %761
        %vm763 = vcmask 1039360
        %v764 = vsel %vm763, %v760, %v762
        %v768 = vsel %vm763, %v762, %v760
        %s769 = scalar_lea.vmem %s4, 10
        %v770 = vld [vmem:[%s769] sm:$0x3]
        %v772 = vlaneseq
        %v773 = vshrl.u32 %v772, 7
        %v774 = vsub.s32 0, %v773
        %v775 = vrot.slane %v770, %v774
        %v776 = vlaneseq
        %v777 = vshrl.u32 %v776, 7
        %v778 = vsub.s32 1, %v777
        %v779 = vrot.slane %v770, %v778
        %v782 = vmul.f32 %v764, %v775
        %v783 = vmul.f32 %v768, %v779
        %s784 = scalar_lea.vmem %s2, 20
        %v785 = vld [vmem:[%s784] sm:$0xf]
        %v787 = vsel %vm297, %v785, 0
        %v790 = vsel %vm301, %v782, 0
        %v793 = vsel %vm301, %v783, 0
        %795 = vmatprep.subr.mxu0 %v793
        %796 = vmatpush1.msra.mxu0 %v790
        %797 = vmatprep.subr.mxu0 0.0
        %798 = vmatpush1.msra.mxu0 0.0
        %799 = vmatprep.subr.mxu0 0.0
        %800 = vmatpush1.msra.mxu0 0.0
        %801 = vmatprep.subr.mxu0 0.0
        %802 = vmatpush1.msra.mxu0 0.0
        %803 = vmatprep.subr.mxu0 0.0
        %804 = vmatpush1.msra.mxu0 0.0
        %805 = vmatprep.subr.mxu0 0.0
        %806 = vmatpush1.msra.mxu0 0.0
        %807 = vmatprep.subr.mxu0 0.0
        %808 = vmatpush1.msra.mxu0 0.0
        %809 = vmatprep.subr.mxu0 0.0
        %810 = vmatpush1.msra.mxu0 0.0
        %811 = vmatprep.subr.mxu0 0.0
        %812 = vmatpush1.msra.mxu0 0.0
        %813 = vmatprep.subr.mxu0 0.0
        %814 = vmatpush1.msra.mxu0 0.0
        %815 = vmatprep.subr.mxu0 0.0
        %816 = vmatpush1.msra.mxu0 0.0
        %817 = vmatprep.subr.mxu0 0.0
        %818 = vmatpush1.msra.mxu0 0.0
        %819 = vmatprep.subr.mxu0 0.0
        %820 = vmatpush1.msra.mxu0 0.0
        %821 = vmatprep.subr.mxu0 0.0
        %822 = vmatpush1.msra.mxu0 0.0
        %823 = vmatprep.subr.mxu0 0.0
        %824 = vmatpush1.msra.mxu0 0.0
        %825 = vmatprep.subr.mxu0 0.0
        %826 = vmatpush1.msra.mxu0 0.0
        %827 = vmatprep.subr.mxu0 0.0
        %828 = vmatpush1.msra.mxu0 0.0
        %829 = vmatprep.subr.mxu0 0.0
        %830 = vmatpush1.msra.mxu0 0.0
        %831 = vmatprep.subr.mxu0 0.0
        %832 = vmatpush1.msra.mxu0 0.0
        %833 = vmatprep.subr.mxu0 0.0
        %834 = vmatpush1.msra.mxu0 0.0
        %835 = vmatprep.subr.mxu0 0.0
        %836 = vmatpush1.msra.mxu0 0.0
        %837 = vmatprep.subr.mxu0 0.0
        %838 = vmatpush1.msra.mxu0 0.0
        %839 = vmatprep.subr.mxu0 0.0
        %840 = vmatpush1.msra.mxu0 0.0
        %841 = vmatprep.subr.mxu0 0.0
        %842 = vmatpush1.msra.mxu0 0.0
        %843 = vmatprep.subr.mxu0 0.0
        %844 = vmatpush1.msra.mxu0 0.0
        %845 = vmatprep.subr.mxu0 0.0
        %846 = vmatpush1.msra.mxu0 0.0
        %847 = vmatprep.subr.mxu0 0.0
        %848 = vmatpush1.msra.mxu0 0.0
        %849 = vmatprep.subr.mxu0 0.0
        %850 = vmatpush1.msra.mxu0 0.0
        %851 = vmatprep.subr.mxu0 0.0
        %852 = vmatpush1.msra.mxu0 0.0
        %853 = vmatprep.subr.mxu0 0.0
        %854 = vmatpush1.msra.mxu0 0.0
        %855 = vmatprep.subr.mxu0 0.0
        %856 = vmatpush1.msra.mxu0 0.0
        %857 = vmatprep.subr.mxu0 0.0
        %858 = vmatpush1.msra.mxu0 0.0
        %859 = vmatprep.mubr.f32.mxu0 0.0
        %860 = vmatmul.mubr.f32.gmra.mrb[0].mxu0 %v787
        %v861 = vpop.f32.mrb[0].mxu0
        %v862 = vadd.f32 0.0, %v861
        %v863 = vpop.f32.mrb[0].mxu0
        %v864 = vadd.f32 0.0, %v863
        %865 = vdwg.mxu0
        %v866 = vadd.f32 %v757, %v862
        %v867 = vadd.f32 %v758, %v864
        %868 = vrot.lane.b32.xlu0 %v242, 113
        %v869 = vpop.permute.xlu0 %868
        %870 = vrot.lane.b32.xlu0 %v244, 113
        %v871 = vpop.permute.xlu0 %870
        %vm872 = vcmask 924672
        %v873 = vsel %vm872, %v869, %v871
        %v877 = vsel %vm872, %v871, %v869
        %s878 = scalar_lea.vmem %s4, 12
        %v879 = vld [vmem:[%s878] sm:$0x3]
        %v881 = vlaneseq
        %v882 = vshrl.u32 %v881, 7
        %v883 = vsub.s32 0, %v882
        %v884 = vrot.slane %v879, %v883
        %v885 = vlaneseq
        %v886 = vshrl.u32 %v885, 7
        %v887 = vsub.s32 1, %v886
        %v888 = vrot.slane %v879, %v887
        %v891 = vmul.f32 %v873, %v884
        %v892 = vmul.f32 %v877, %v888
        %s893 = scalar_lea.vmem %s2, 24
        %v894 = vld [vmem:[%s893] sm:$0xf]
        %v896 = vsel %vm297, %v894, 0
        %v899 = vsel %vm301, %v891, 0
        %v902 = vsel %vm301, %v892, 0
        %904 = vmatprep.subr.mxu0 %v902
        %905 = vmatpush1.msra.mxu0 %v899
        %906 = vmatprep.subr.mxu0 0.0
        %907 = vmatpush1.msra.mxu0 0.0
        %908 = vmatprep.subr.mxu0 0.0
        %909 = vmatpush1.msra.mxu0 0.0
        %910 = vmatprep.subr.mxu0 0.0
        %911 = vmatpush1.msra.mxu0 0.0
        %912 = vmatprep.subr.mxu0 0.0
        %913 = vmatpush1.msra.mxu0 0.0
        %914 = vmatprep.subr.mxu0 0.0
        %915 = vmatpush1.msra.mxu0 0.0
        %916 = vmatprep.subr.mxu0 0.0
        %917 = vmatpush1.msra.mxu0 0.0
        %918 = vmatprep.subr.mxu0 0.0
        %919 = vmatpush1.msra.mxu0 0.0
        %920 = vmatprep.subr.mxu0 0.0
        %921 = vmatpush1.msra.mxu0 0.0
        %922 = vmatprep.subr.mxu0 0.0
        %923 = vmatpush1.msra.mxu0 0.0
        %924 = vmatprep.subr.mxu0 0.0
        %925 = vmatpush1.msra.mxu0 0.0
        %926 = vmatprep.subr.mxu0 0.0
        %927 = vmatpush1.msra.mxu0 0.0
        %928 = vmatprep.subr.mxu0 0.0
        %929 = vmatpush1.msra.mxu0 0.0
        %930 = vmatprep.subr.mxu0 0.0
        %931 = vmatpush1.msra.mxu0 0.0
        %932 = vmatprep.subr.mxu0 0.0
        %933 = vmatpush1.msra.mxu0 0.0
        %934 = vmatprep.subr.mxu0 0.0
        %935 = vmatpush1.msra.mxu0 0.0
        %936 = vmatprep.subr.mxu0 0.0
        %937 = vmatpush1.msra.mxu0 0.0
        %938 = vmatprep.subr.mxu0 0.0
        %939 = vmatpush1.msra.mxu0 0.0
        %940 = vmatprep.subr.mxu0 0.0
        %941 = vmatpush1.msra.mxu0 0.0
        %942 = vmatprep.subr.mxu0 0.0
        %943 = vmatpush1.msra.mxu0 0.0
        %944 = vmatprep.subr.mxu0 0.0
        %945 = vmatpush1.msra.mxu0 0.0
        %946 = vmatprep.subr.mxu0 0.0
        %947 = vmatpush1.msra.mxu0 0.0
        %948 = vmatprep.subr.mxu0 0.0
        %949 = vmatpush1.msra.mxu0 0.0
        %950 = vmatprep.subr.mxu0 0.0
        %951 = vmatpush1.msra.mxu0 0.0
        %952 = vmatprep.subr.mxu0 0.0
        %953 = vmatpush1.msra.mxu0 0.0
        %954 = vmatprep.subr.mxu0 0.0
        %955 = vmatpush1.msra.mxu0 0.0
        %956 = vmatprep.subr.mxu0 0.0
        %957 = vmatpush1.msra.mxu0 0.0
        %958 = vmatprep.subr.mxu0 0.0
        %959 = vmatpush1.msra.mxu0 0.0
        %960 = vmatprep.subr.mxu0 0.0
        %961 = vmatpush1.msra.mxu0 0.0
        %962 = vmatprep.subr.mxu0 0.0
        %963 = vmatpush1.msra.mxu0 0.0
        %964 = vmatprep.subr.mxu0 0.0
        %965 = vmatpush1.msra.mxu0 0.0
        %966 = vmatprep.subr.mxu0 0.0
        %967 = vmatpush1.msra.mxu0 0.0
        %968 = vmatprep.mubr.f32.mxu0 0.0
        %969 = vmatmul.mubr.f32.gmra.mrb[0].mxu0 %v896
        %v970 = vpop.f32.mrb[0].mxu0
        %v971 = vadd.f32 0.0, %v970
        %v972 = vpop.f32.mrb[0].mxu0
        %v973 = vadd.f32 0.0, %v972
        %974 = vdwg.mxu0
        %v975 = vadd.f32 %v866, %v971
        %v976 = vadd.f32 %v867, %v973
        %977 = vrot.lane.b32.xlu0 %v242, 112
        %v978 = vpop.permute.xlu0 %977
        %979 = vrot.lane.b32.xlu0 %v244, 112
        %v980 = vpop.permute.xlu0 %979
        %vm981 = vcmask 916480
        %v982 = vsel %vm981, %v978, %v980
        %v986 = vsel %vm981, %v980, %v978
        %s987 = scalar_lea.vmem %s4, 14
        %v988 = vld [vmem:[%s987] sm:$0x3]
        %v990 = vlaneseq
        %v991 = vshrl.u32 %v990, 7
        %v992 = vsub.s32 0, %v991
        %v993 = vrot.slane %v988, %v992
        %v994 = vlaneseq
        %v995 = vshrl.u32 %v994, 7
        %v996 = vsub.s32 1, %v995
        %v997 = vrot.slane %v988, %v996
        %v1000 = vmul.f32 %v982, %v993
        %v1001 = vmul.f32 %v986, %v997
        %s1002 = scalar_lea.vmem %s2, 28
        %v1003 = vld [vmem:[%s1002] sm:$0xf]
        %v1005 = vsel %vm297, %v1003, 0
        %v1008 = vsel %vm301, %v1000, 0
        %v1011 = vsel %vm301, %v1001, 0
        %1013 = vmatprep.subr.mxu0 %v1011
        %1014 = vmatpush1.msra.mxu0 %v1008
        %1015 = vmatprep.subr.mxu0 0.0
        %1016 = vmatpush1.msra.mxu0 0.0
        %1017 = vmatprep.subr.mxu0 0.0
        %1018 = vmatpush1.msra.mxu0 0.0
        %1019 = vmatprep.subr.mxu0 0.0
        %1020 = vmatpush1.msra.mxu0 0.0
        %1021 = vmatprep.subr.mxu0 0.0
        %1022 = vmatpush1.msra.mxu0 0.0
        %1023 = vmatprep.subr.mxu0 0.0
        %1024 = vmatpush1.msra.mxu0 0.0
        %1025 = vmatprep.subr.mxu0 0.0
        %1026 = vmatpush1.msra.mxu0 0.0
        %1027 = vmatprep.subr.mxu0 0.0
        %1028 = vmatpush1.msra.mxu0 0.0
        %1029 = vmatprep.subr.mxu0 0.0
        %1030 = vmatpush1.msra.mxu0 0.0
        %1031 = vmatprep.subr.mxu0 0.0
        %1032 = vmatpush1.msra.mxu0 0.0
        %1033 = vmatprep.subr.mxu0 0.0
        %1034 = vmatpush1.msra.mxu0 0.0
        %1035 = vmatprep.subr.mxu0 0.0
        %1036 = vmatpush1.msra.mxu0 0.0
        %1037 = vmatprep.subr.mxu0 0.0
        %1038 = vmatpush1.msra.mxu0 0.0
        %1039 = vmatprep.subr.mxu0 0.0
        %1040 = vmatpush1.msra.mxu0 0.0
        %1041 = vmatprep.subr.mxu0 0.0
        %1042 = vmatpush1.msra.mxu0 0.0
        %1043 = vmatprep.subr.mxu0 0.0
        %1044 = vmatpush1.msra.mxu0 0.0
        %1045 = vmatprep.subr.mxu0 0.0
        %1046 = vmatpush1.msra.mxu0 0.0
        %1047 = vmatprep.subr.mxu0 0.0
        %1048 = vmatpush1.msra.mxu0 0.0
        %1049 = vmatprep.subr.mxu0 0.0
        %1050 = vmatpush1.msra.mxu0 0.0
        %1051 = vmatprep.subr.mxu0 0.0
        %1052 = vmatpush1.msra.mxu0 0.0
        %1053 = vmatprep.subr.mxu0 0.0
        %1054 = vmatpush1.msra.mxu0 0.0
        %1055 = vmatprep.subr.mxu0 0.0
        %1056 = vmatpush1.msra.mxu0 0.0
        %1057 = vmatprep.subr.mxu0 0.0
        %1058 = vmatpush1.msra.mxu0 0.0
        %1059 = vmatprep.subr.mxu0 0.0
        %1060 = vmatpush1.msra.mxu0 0.0
        %1061 = vmatprep.subr.mxu0 0.0
        %1062 = vmatpush1.msra.mxu0 0.0
        %1063 = vmatprep.subr.mxu0 0.0
        %1064 = vmatpush1.msra.mxu0 0.0
        %1065 = vmatprep.subr.mxu0 0.0
        %1066 = vmatpush1.msra.mxu0 0.0
        %1067 = vmatprep.subr.mxu0 0.0
        %1068 = vmatpush1.msra.mxu0 0.0
        %1069 = vmatprep.subr.mxu0 0.0
        %1070 = vmatpush1.msra.mxu0 0.0
        %1071 = vmatprep.subr.mxu0 0.0
        %1072 = vmatpush1.msra.mxu0 0.0
        %1073 = vmatprep.subr.mxu0 0.0
        %1074 = vmatpush1.msra.mxu0 0.0
        %1075 = vmatprep.subr.mxu0 0.0
        %1076 = vmatpush1.msra.mxu0 0.0
        %1077 = vmatprep.mubr.f32.mxu0 0.0
        %1078 = vmatmul.mubr.f32.gmra.mrb[0].mxu0 %v1005
        %v1079 = vpop.f32.mrb[0].mxu0
        %v1080 = vadd.f32 0.0, %v1079
        %v1081 = vpop.f32.mrb[0].mxu0
        %v1082 = vadd.f32 0.0, %v1081
        %1083 = vdwg.mxu0
        %v1084 = vadd.f32 %v975, %v1080
        %v1085 = vadd.f32 %v976, %v1082
        %1086 = vrot.lane.b32.xlu0 %v242, 111
        %v1087 = vpop.permute.xlu0 %1086
        %1088 = vrot.lane.b32.xlu0 %v244, 111
        %v1089 = vpop.permute.xlu0 %1088
        %vm1090 = vcmask 908288
        %v1091 = vsel %vm1090, %v1087, %v1089
        %v1095 = vsel %vm1090, %v1089, %v1087
        %s1096 = scalar_lea.vmem %s4, 16
        %v1097 = vld [vmem:[%s1096] sm:$0x3]
        %v1099 = vlaneseq
        %v1100 = vshrl.u32 %v1099, 7
        %v1101 = vsub.s32 0, %v1100
        %v1102 = vrot.slane %v1097, %v1101
        %v1103 = vlaneseq
        %v1104 = vshrl.u32 %v1103, 7
        %v1105 = vsub.s32 1, %v1104
        %v1106 = vrot.slane %v1097, %v1105
        %v1109 = vmul.f32 %v1091, %v1102
        %v1110 = vmul.f32 %v1095, %v1106
        %s1111 = scalar_lea.vmem %s2, 32
        %v1112 = vld [vmem:[%s1111] sm:$0xf]
        %v1114 = vsel %vm297, %v1112, 0
        %v1117 = vsel %vm301, %v1109, 0
        %v1120 = vsel %vm301, %v1110, 0
        %1122 = vmatprep.subr.mxu0 %v1120
        %1123 = vmatpush1.msra.mxu0 %v1117
        %1124 = vmatprep.subr.mxu0 0.0
        %1125 = vmatpush1.msra.mxu0 0.0
        %1126 = vmatprep.subr.mxu0 0.0
        %1127 = vmatpush1.msra.mxu0 0.0
        %1128 = vmatprep.subr.mxu0 0.0
        %1129 = vmatpush1.msra.mxu0 0.0
        %1130 = vmatprep.subr.mxu0 0.0
        %1131 = vmatpush1.msra.mxu0 0.0
        %1132 = vmatprep.subr.mxu0 0.0
        %1133 = vmatpush1.msra.mxu0 0.0
        %1134 = vmatprep.subr.mxu0 0.0
        %1135 = vmatpush1.msra.mxu0 0.0
        %1136 = vmatprep.subr.mxu0 0.0
        %1137 = vmatpush1.msra.mxu0 0.0
        %1138 = vmatprep.subr.mxu0 0.0
        %1139 = vmatpush1.msra.mxu0 0.0
        %1140 = vmatprep.subr.mxu0 0.0
        %1141 = vmatpush1.msra.mxu0 0.0
        %1142 = vmatprep.subr.mxu0 0.0
        %1143 = vmatpush1.msra.mxu0 0.0
        %1144 = vmatprep.subr.mxu0 0.0
        %1145 = vmatpush1.msra.mxu0 0.0
        %1146 = vmatprep.subr.mxu0 0.0
        %1147 = vmatpush1.msra.mxu0 0.0
        %1148 = vmatprep.subr.mxu0 0.0
        %1149 = vmatpush1.msra.mxu0 0.0
        %1150 = vmatprep.subr.mxu0 0.0
        %1151 = vmatpush1.msra.mxu0 0.0
        %1152 = vmatprep.subr.mxu0 0.0
        %1153 = vmatpush1.msra.mxu0 0.0
        %1154 = vmatprep.subr.mxu0 0.0
        %1155 = vmatpush1.msra.mxu0 0.0
        %1156 = vmatprep.subr.mxu0 0.0
        %1157 = vmatpush1.msra.mxu0 0.0
        %1158 = vmatprep.subr.mxu0 0.0
        %1159 = vmatpush1.msra.mxu0 0.0
        %1160 = vmatprep.subr.mxu0 0.0
        %1161 = vmatpush1.msra.mxu0 0.0
        %1162 = vmatprep.subr.mxu0 0.0
        %1163 = vmatpush1.msra.mxu0 0.0
        %1164 = vmatprep.subr.mxu0 0.0
        %1165 = vmatpush1.msra.mxu0 0.0
        %1166 = vmatprep.subr.mxu0 0.0
        %1167 = vmatpush1.msra.mxu0 0.0
        %1168 = vmatprep.subr.mxu0 0.0
        %1169 = vmatpush1.msra.mxu0 0.0
        %1170 = vmatprep.subr.mxu0 0.0
        %1171 = vmatpush1.msra.mxu0 0.0
        %1172 = vmatprep.subr.mxu0 0.0
        %1173 = vmatpush1.msra.mxu0 0.0
        %1174 = vmatprep.subr.mxu0 0.0
        %1175 = vmatpush1.msra.mxu0 0.0
        %1176 = vmatprep.subr.mxu0 0.0
        %1177 = vmatpush1.msra.mxu0 0.0
        %1178 = vmatprep.subr.mxu0 0.0
        %1179 = vmatpush1.msra.mxu0 0.0
        %1180 = vmatprep.subr.mxu0 0.0
        %1181 = vmatpush1.msra.mxu0 0.0
        %1182 = vmatprep.subr.mxu0 0.0
        %1183 = vmatpush1.msra.mxu0 0.0
        %1184 = vmatprep.subr.mxu0 0.0
        %1185 = vmatpush1.msra.mxu0 0.0
        %1186 = vmatprep.mubr.f32.mxu0 0.0
        %1187 = vmatmul.mubr.f32.gmra.mrb[0].mxu0 %v1114
        %v1188 = vpop.f32.mrb[0].mxu0
        %v1189 = vadd.f32 0.0, %v1188
        %v1190 = vpop.f32.mrb[0].mxu0
        %v1191 = vadd.f32 0.0, %v1190
        %1192 = vdwg.mxu0
        %v1193 = vadd.f32 %v1084, %v1189
        %v1194 = vadd.f32 %v1085, %v1191
        %v1195 = vld [vmem:[%s3] sm:$0xf]
        %1197 = vset.pattern.permute.xlu0 0
        %1198 = vperm.xlu0 %1197, %v1195
        %v1199 = vpop.permute.xlu0 %1198
        %v1201 = vadd.f32 %v1193, %v1199
        %v1202 = vadd.f32 %v1194, %v1199
        %v1203 = vld [vmem:[%s241] sm:$0xff]
        %v1205 = vcombine.high %v1203, %v1203
        %v1207 = vsub.f32 %v1201, %v1203
        %v1208 = vsub.f32 %v1202, %v1205
        %v1209 = vmul.f32 %v1207, %v1207
        %v1210 = vmul.f32 %v1208, %v1208
        %v1211 = vadd.f32 %v1209, %v1210
        %v1212 = vsel %vm301, %v1211, 0.0
        %v1213 = vrot.slane %v1212, 4
        %v1214 = vadd.f32 %v1212, %v1213
        %v1215 = vrot.slane %v1214, 2
        %v1216 = vadd.f32 %v1214, %v1215
        %v1217 = vrot.slane %v1216, 1
        %v1218 = vadd.f32 %v1216, %v1217
        %1219 = vst [vmem:[%s231] sm:$0x1] %v1218
        %s1220 = sand.u32 %s142, 1
        %s1221 = scalar_lea.sflag [#allocation3], %s1220
        %s1222 = sand.u32 %s142, 1
        %s1223 = scalar_lea.vmem [#allocation2], %s1222
        // Predicated region
        $region41: #{tpu_custom_call.1} parent=39 // pred_check
          %p1224 = pneg %p152
        $region42: #{tpu_custom_call.1} parent=39 // pred_check_branch
          %1226 = sbr.rel (%p1224) target = $region44
        $region43: #{tpu_custom_call.1} parent=39 // pred_region
          %s1228 = ssub.s32 16, 16
          %1229 = vsyncadd %s1221, %s1228
          %s1230 = smul.addr %s19, 16
          %s1231 = scalar_lea.hbm %s5, %s1230
          %s1233 = sshll.u32 %s1223, 4
          %s1234 = int_to_ptr.vmem [resolvable:$true] %s1233
          %1236 = dma.vmem_to_hbm [thread:$0]  %s1234, 16, %s1231, %s1221
        $region44: #{tpu_custom_call.1} parent=39 // pred_fallthru
          _
      $region40: #{tpu_custom_call.1} parent=5 // pred_fallthru
        _
      %p1237 = scmp.le.s32.totalorder 2, %s14
      // Predicated region
      $region45: #{tpu_custom_call.1} parent=5 // pred_check
        %p1238 = pneg %p1237
      $region46: #{tpu_custom_call.1} parent=5 // pred_check_branch
        %1240 = sbr.rel (%p1238) target = $region48
      $region47: #{tpu_custom_call.1} parent=5 // pred_region
        %s1241 = ssub.s32 %s14, 2
        // Predicated region
        $region49: #{tpu_custom_call.1} parent=47 // pred_check
          %p1242 = pneg %p158
        $region50: #{tpu_custom_call.1} parent=47 // pred_check_branch
          %1244 = sbr.rel (%p1242) target = $region52
        $region51: #{tpu_custom_call.1} parent=47 // pred_region
          %s1245 = sand.u32 %s143, 1
          %s1246 = scalar_lea.sflag [#allocation3], %s1245
          %s1247 = sand.u32 %s143, 1
          %s1248 = scalar_lea.vmem [#allocation2], %s1247
          %1249 = dma.done %s1246, 16
        $region52: #{tpu_custom_call.1} parent=47 // pred_fallthru
          _
      $region48: #{tpu_custom_call.1} parent=5 // pred_fallthru
        _
    $region6: #{tpu_custom_call.1} parent=1 // loop_footer
      %s18 = sadd.s32 1, %s14
    $region7: #{tpu_custom_call.1} parent=1 // loop_footer_branch
      %13 = sbr.rel target = $region3
    $region8: #{tpu_custom_call.1} parent=1 // loop_exit
      _
    %1250 = vsyncpa [#allocation3], 1
    %s1251 = scalar_lea.sflag [#allocation3], 1
    %1252 = vsyncpa %s1251, 1

</llo_original>
